<compile_context>
chip_gen: v6e
topology: v6e:2x2x1
jax: 0.10.0
libtpu: 0.0.40
codegen_flags: <defaults>
</compile_context>

<pallas_src>
import functools

import jax
import jax.numpy as jnp
import numpy as np
from jax.experimental import pallas as pl
from jax.experimental.pallas import tpu as pltpu

EPS = 1e-5


def _double_conv_kernel(x_ref, w1_ref, b1_ref, g1_ref, bt1_ref,
                        w2_ref, b2_ref, g2_ref, bt2_ref, m_ref,
                        out_ref, *, H, W):
    NH = x_ref.shape[0]
    inv_cnt = 1.0 / float(NH * W)
    m = m_ref[...]                    # (W*C, W*C) 0/1 channel-summing matrix

    def conv3x3(y, w_ref, bias_row):
        # y: (N*H, W*Ci) f32, row r = (n, h).  kx taps + W padding live inside
        # the banded weights; ky taps are row shifts with per-sample masking.
        h_idx = jax.lax.broadcasted_iota(jnp.int32, y.shape, 0) % H
        up = jnp.where(h_idx == 0, 0.0, jnp.roll(y, 1, axis=0))       # x[n, h-1]
        dn = jnp.where(h_idx == H - 1, 0.0, jnp.roll(y, -1, axis=0))  # x[n, h+1]
        acc = jnp.dot(up.astype(jnp.bfloat16), w_ref[0],
                      preferred_element_type=jnp.float32)
        acc = acc + jnp.dot(y.astype(jnp.bfloat16), w_ref[1],
                            preferred_element_type=jnp.float32)
        acc = acc + jnp.dot(dn.astype(jnp.bfloat16), w_ref[2],
                            preferred_element_type=jnp.float32)
        return acc + bias_row

    def bn_relu(acc, gamma_row, beta_row):
        # One-pass batch stats (biased var) folded into scale/shift, then ReLU.
        s1 = jnp.sum(jnp.dot(acc, m, preferred_element_type=jnp.float32),
                     axis=0, keepdims=True)            # (1, W*C), lane-tiled
        s2 = jnp.sum(jnp.dot(acc * acc, m, preferred_element_type=jnp.float32),
                     axis=0, keepdims=True)
        mean = s1 * inv_cnt
        var = s2 * inv_cnt - mean * mean
        scale = gamma_row * jax.lax.rsqrt(var + EPS)
        shift = beta_row - mean * scale
        return jnp.maximum(acc * scale + shift, 0.0)

    y1 = bn_relu(conv3x3(x_ref[...], w1_ref, b1_ref[...]),
                 g1_ref[...], bt1_ref[...])
    y2 = bn_relu(conv3x3(y1, w2_ref, b2_ref[...]),
                 g2_ref[...], bt2_ref[...])
    out_ref[...] = y2                                   # lane-dense store


def _band_weights(w_hwio, W):
    """HWIO (3,3,Ci,Co) -> (3, W*Ci, W*Co) bf16 block-banded matrices.

    mats[ky][w_in*Ci + ci, w_out*Co + co] = w[ky, w_in - w_out + 1, ci, co]
    (zero outside the 3-wide band -> implicit zero padding along W).
    """
    kh, kw, ci, _ = w_hwio.shape
    mats = []
    for ky in range(kh):
        mat = None
        for kx in range(kw):
            eye = jnp.eye(W, W, k=-(kx - 1), dtype=jnp.float32)
            blk = jnp.kron(eye, w_hwio[ky, kx].astype(jnp.float32))
            mat = blk if mat is None else mat + blk
        mats.append(mat)
    return jnp.stack(mats).astype(jnp.bfloat16)


def double_conv(x_nchw, params):
    """x_nchw: (N, Cin, H, W) float32 -> (N, Cout, H, W) float32."""
    w1, b1, g1, bt1, w2, b2, g2, bt2 = params
    N, Cin, H, W = x_nchw.shape
    Cout = w1.shape[-1]
    NH, K1, WC = N * H, W * Cin, W * Cout

    # Channels-last with W fused into the lane axis -> lane-dense tiles.
    x2d = jnp.transpose(x_nchw, (0, 2, 3, 1)).reshape(NH, K1).astype(jnp.float32)

    w1b = _band_weights(w1, W)                     # (3, W*Cin,  W*Cout) bf16
    w2b = _band_weights(w2, W)                     # (3, W*Cout, W*Cout) bf16
    # Sums the fused W*C lane axis per channel; stats come back already tiled.
    m = jnp.kron(jnp.ones((W, W), jnp.float32), jnp.eye(Cout, dtype=jnp.float32))

    def tile_c(v):                                  # (C,) -> (1, W*C)
        return jnp.tile(v.reshape(1, Cout).astype(jnp.float32), (1, W))

    args = (x2d, w1b, tile_c(b1), tile_c(g1), tile_c(bt1),
            w2b, tile_c(b2), tile_c(g2), tile_c(bt2), m)

    def fullspec(a):
        nd = a.ndim
        return pl.BlockSpec(a.shape, lambda i, nd=nd: (0,) * nd)

    flops = int(2 * NH * WC * (3 * K1 + 7 * WC))
    bytes_accessed = int(sum(a.size * a.dtype.itemsize for a in args)
                         + NH * WC * 4)

    out2d = pl.pallas_call(
        functools.partial(_double_conv_kernel, H=H, W=W),
        out_shape=jax.ShapeDtypeStruct((NH, WC), jnp.float32),
        grid=(1,),
        in_specs=[fullspec(a) for a in args],
        out_specs=pl.BlockSpec((NH, WC), lambda i: (0, 0)),
        compiler_params=pltpu.CompilerParams(
            dimension_semantics=("arbitrary",),
            vmem_limit_bytes=32 * 1024 * 1024),
        cost_estimate=pl.CostEstimate(flops=flops,
                                      transcendentals=2 * WC,
                                      bytes_accessed=bytes_accessed),
    )(*args)

    return jnp.transpose(out2d.reshape(N, H, W, Cout), (0, 3, 1, 2))


def ref_double_conv(x_nchw, params):
    """Pure-JAX f32 reference for validation."""
    w1, b1, g1, bt1, w2, b2, g2, bt2 = params
    x = jnp.transpose(x_nchw, (0, 2, 3, 1)).astype(jnp.float32)

    def conv(a, w, b):
        y = jax.lax.conv_general_dilated(
            a, w, (1, 1), "SAME",
            dimension_numbers=("NHWC", "HWIO", "NHWC"))
        return y + b

    def bn_relu(y, g, bt):
        mean = jnp.mean(y, axis=(0, 1, 2), keepdims=True)
        var = jnp.mean((y - mean) ** 2, axis=(0, 1, 2), keepdims=True)
        return jnp.maximum((y - mean) * jax.lax.rsqrt(var + EPS) * g + bt, 0.0)

    y = bn_relu(conv(x, w1, b1), g1, bt1)
    y = bn_relu(conv(y, w2, b2), g2, bt2)
    return jnp.transpose(y, (0, 3, 1, 2))


if __name__ == "__main__":
    N, Cin, Cout, H, W = 2, 4, 8, 16, 16

    key = jax.random.PRNGKey(0)
    kx_, kw1, kb1, kw2, kb2 = jax.random.split(key, 5)

    x = jax.random.normal(kx_, (N, Cin, H, W), jnp.float32)

    # Conv2d weights (HWIO) / biases; BatchNorm gamma=1, beta=0 (default init).
    w1 = jax.random.normal(kw1, (3, 3, Cin, Cout), jnp.float32) * 0.1
    b1 = jax.random.normal(kb1, (Cout,), jnp.float32) * 0.1
    g1 = jnp.ones((Cout,), jnp.float32)
    bt1 = jnp.zeros((Cout,), jnp.float32)
    w2 = jax.random.normal(kw2, (3, 3, Cout, Cout), jnp.float32) * 0.1
    b2 = jax.random.normal(kb2, (Cout,), jnp.float32) * 0.1
    g2 = jnp.ones((Cout,), jnp.float32)
    bt2 = jnp.zeros((Cout,), jnp.float32)

    params = (w1, b1, g1, bt1, w2, b2, g2, bt2)

    out = jax.block_until_ready(double_conv(x, params))
    ref = jax.block_until_ready(ref_double_conv(x, params))

    assert out.shape == (N, Cout, H, W)
    # bf16 MXU inputs vs pure-f32 reference -> mixed-precision tolerance.
    np.testing.assert_allclose(np.asarray(out), np.asarray(ref),
                               rtol=2e-2, atol=2e-2)
    print("KERNEL_OK")
</pallas_src>

<mosaic_0001>
module attributes {stable_mosaic.version = 11 : i64} {
  func.func @_double_conv_kernel(%arg0: i32, %arg1: memref<32x64xf32, #tpu.memory_space<vmem>>, %arg2: memref<3x64x128xbf16, #tpu.memory_space<vmem>>, %arg3: memref<1x128xf32, #tpu.memory_space<vmem>>, %arg4: memref<1x128xf32, #tpu.memory_space<vmem>>, %arg5: memref<1x128xf32, #tpu.memory_space<vmem>>, %arg6: memref<3x128x128xbf16, #tpu.memory_space<vmem>>, %arg7: memref<1x128xf32, #tpu.memory_space<vmem>>, %arg8: memref<1x128xf32, #tpu.memory_space<vmem>>, %arg9: memref<1x128xf32, #tpu.memory_space<vmem>>, %arg10: memref<128x128xf32, #tpu.memory_space<vmem>>, %arg11: memref<32x128xf32, #tpu.memory_space<vmem>>) attributes {dimension_semantics = [#tpu.dimension_semantics<arbitrary>], iteration_bounds = array<i64: 1>, scalar_prefetch = 0 : i64, scratch_operands = 0 : i64, tpu.core_type = #tpu.core_type<tc>, window_params = [{pipeline_mode = #tpu.pipeline_mode<synchronous>, transform_indices = @transform_0, window_bounds = array<i64: 32, 64>}, {pipeline_mode = #tpu.pipeline_mode<synchronous>, transform_indices = @transform_1, window_bounds = array<i64: 3, 64, 128>}, {pipeline_mode = #tpu.pipeline_mode<synchronous>, transform_indices = @transform_2, window_bounds = array<i64: 1, 128>}, {pipeline_mode = #tpu.pipeline_mode<synchronous>, transform_indices = @transform_3, window_bounds = array<i64: 1, 128>}, {pipeline_mode = #tpu.pipeline_mode<synchronous>, transform_indices = @transform_4, window_bounds = array<i64: 1, 128>}, {pipeline_mode = #tpu.pipeline_mode<synchronous>, transform_indices = @transform_5, window_bounds = array<i64: 3, 128, 128>}, {pipeline_mode = #tpu.pipeline_mode<synchronous>, transform_indices = @transform_6, window_bounds = array<i64: 1, 128>}, {pipeline_mode = #tpu.pipeline_mode<synchronous>, transform_indices = @transform_7, window_bounds = array<i64: 1, 128>}, {pipeline_mode = #tpu.pipeline_mode<synchronous>, transform_indices = @transform_8, window_bounds = array<i64: 1, 128>}, {pipeline_mode = #tpu.pipeline_mode<synchronous>, transform_indices = @transform_9, window_bounds = array<i64: 128, 128>}, {pipeline_mode = #tpu.pipeline_mode<synchronous>, transform_indices = @transform_10, window_bounds = array<i64: 32, 128>}]} {
    %c0 = arith.constant 0 : index
    %c0_0 = arith.constant 0 : index
    %0 = vector.load %arg10[%c0, %c0_0] : memref<128x128xf32, #tpu.memory_space<vmem>>, vector<128x128xf32>
    %c0_1 = arith.constant 0 : index
    %c0_2 = arith.constant 0 : index
    %1 = vector.load %arg1[%c0_1, %c0_2] : memref<32x64xf32, #tpu.memory_space<vmem>>, vector<32x64xf32>
    %c0_3 = arith.constant 0 : index
    %c0_4 = arith.constant 0 : index
    %2 = vector.load %arg3[%c0_3, %c0_4] : memref<1x128xf32, #tpu.memory_space<vmem>>, vector<1x128xf32>
    %3 = tpu.iota {dimensions = array<i32: 0>} : vector<32x64xi32>
    %c16_i32 = arith.constant 16 : i32
    %c0_i32 = arith.constant 0 : i32
    %4 = arith.cmpi eq, %c16_i32, %c0_i32 : i32
    %c1_i32 = arith.constant 1 : i32
    %5 = arith.select %4, %c1_i32, %c16_i32 : i32
    %6 = vector.broadcast %5 : i32 to vector<32x64xi32>
    %7 = arith.remsi %3, %6 : vector<32x64xi32>
    %c0_i32_5 = arith.constant 0 : i32
    %8 = vector.broadcast %c0_i32_5 : i32 to vector<32x64xi32>
    %9 = arith.cmpi ne, %7, %8 : vector<32x64xi32>
    %c0_i32_6 = arith.constant 0 : i32
    %10 = vector.broadcast %c0_i32_6 : i32 to vector<32x64xi32>
    %11 = arith.cmpi slt, %7, %10 : vector<32x64xi32>
    %c0_i32_7 = arith.constant 0 : i32
    %12 = arith.cmpi slt, %5, %c0_i32_7 : i32
    %13 = vector.broadcast %12 : i1 to vector<32x64xi1>
    %14 = vector.broadcast %13 : vector<32x64xi1> to vector<32x64xi1>
    %15 = arith.xori %11, %14 : vector<32x64xi1>
    %16 = arith.andi %15, %9 : vector<32x64xi1>
    %17 = vector.broadcast %5 : i32 to vector<32x64xi32>
    %18 = arith.addi %7, %17 : vector<32x64xi32>
    %19 = arith.select %16, %18, %7 : vector<32x64xi1>, vector<32x64xi32>
    %c0_i32_8 = arith.constant 0 : i32
    %20 = vector.broadcast %c0_i32_8 : i32 to vector<32x64xi32>
    %21 = arith.cmpi eq, %19, %20 : vector<32x64xi32>
    %22 = vector.extract_strided_slice %1 {offsets = [31, 0], sizes = [1, 64], strides = [1, 1]} : vector<32x64xf32> to vector<1x64xf32>
    %23 = vector.extract_strided_slice %1 {offsets = [0, 0], sizes = [31, 64], strides = [1, 1]} : vector<32x64xf32> to vector<31x64xf32>
    %24 = tpu.concatenate %22, %23 in 0 : vector<1x64xf32>, vector<31x64xf32> -> vector<32x64xf32>
    %cst = arith.constant 0.000000e+00 : f32
    %25 = vector.broadcast %cst : f32 to vector<32x64xf32>
    %26 = arith.select %21, %25, %24 : vector<32x64xi1>, vector<32x64xf32>
    %c15_i32 = arith.constant 15 : i32
    %27 = vector.broadcast %c15_i32 : i32 to vector<32x64xi32>
    %28 = arith.cmpi eq, %19, %27 : vector<32x64xi32>
    %29 = vector.extract_strided_slice %1 {offsets = [1, 0], sizes = [31, 64], strides = [1, 1]} : vector<32x64xf32> to vector<31x64xf32>
    %30 = vector.extract_strided_slice %1 {offsets = [0, 0], sizes = [1, 64], strides = [1, 1]} : vector<32x64xf32> to vector<1x64xf32>
    %31 = tpu.concatenate %29, %30 in 0 : vector<31x64xf32>, vector<1x64xf32> -> vector<32x64xf32>
    %cst_9 = arith.constant 0.000000e+00 : f32
    %32 = vector.broadcast %cst_9 : f32 to vector<32x64xf32>
    %33 = arith.select %28, %32, %31 : vector<32x64xi1>, vector<32x64xf32>
    %34 = arith.truncf %26 : vector<32x64xf32> to vector<32x64xbf16>
    %c0_10 = arith.constant 0 : index
    %c0_11 = arith.constant 0 : index
    %c0_12 = arith.constant 0 : index
    %35 = vector.load %arg2[%c0_10, %c0_11, %c0_12] : memref<3x64x128xbf16, #tpu.memory_space<vmem>>, vector<1x64x128xbf16>
    %36 = vector.shape_cast %35 : vector<1x64x128xbf16> to vector<64x128xbf16>
    %cst_13 = arith.constant dense<0.000000e+00> : vector<32x128xf32>
    %37 = tpu.matmul %34, %36, %cst_13 {dimension_numbers = #tpu.dot_dimension_numbers<[1], [0], [0], [1], [0, 0, 1, 1], [], []>} : vector<32x64xbf16>, vector<64x128xbf16>, vector<32x128xf32> -> vector<32x128xf32>
    %38 = arith.truncf %1 : vector<32x64xf32> to vector<32x64xbf16>
    %c1 = arith.constant 1 : index
    %c0_14 = arith.constant 0 : index
    %c0_15 = arith.constant 0 : index
    %39 = vector.load %arg2[%c1, %c0_14, %c0_15] : memref<3x64x128xbf16, #tpu.memory_space<vmem>>, vector<1x64x128xbf16>
    %40 = vector.shape_cast %39 : vector<1x64x128xbf16> to vector<64x128xbf16>
    %cst_16 = arith.constant dense<0.000000e+00> : vector<32x128xf32>
    %41 = tpu.matmul %38, %40, %cst_16 {dimension_numbers = #tpu.dot_dimension_numbers<[1], [0], [0], [1], [0, 0, 1, 1], [], []>} : vector<32x64xbf16>, vector<64x128xbf16>, vector<32x128xf32> -> vector<32x128xf32>
    %42 = arith.addf %37, %41 : vector<32x128xf32>
    %43 = arith.truncf %33 : vector<32x64xf32> to vector<32x64xbf16>
    %c2 = arith.constant 2 : index
    %c0_17 = arith.constant 0 : index
    %c0_18 = arith.constant 0 : index
    %44 = vector.load %arg2[%c2, %c0_17, %c0_18] : memref<3x64x128xbf16, #tpu.memory_space<vmem>>, vector<1x64x128xbf16>
    %45 = vector.shape_cast %44 : vector<1x64x128xbf16> to vector<64x128xbf16>
    %cst_19 = arith.constant dense<0.000000e+00> : vector<32x128xf32>
    %46 = tpu.matmul %43, %45, %cst_19 {dimension_numbers = #tpu.dot_dimension_numbers<[1], [0], [0], [1], [0, 0, 1, 1], [], []>} : vector<32x64xbf16>, vector<64x128xbf16>, vector<32x128xf32> -> vector<32x128xf32>
    %47 = arith.addf %42, %46 : vector<32x128xf32>
    %48 = vector.broadcast %2 : vector<1x128xf32> to vector<32x128xf32>
    %49 = arith.addf %47, %48 : vector<32x128xf32>
    %c0_20 = arith.constant 0 : index
    %c0_21 = arith.constant 0 : index
    %50 = vector.load %arg4[%c0_20, %c0_21] : memref<1x128xf32, #tpu.memory_space<vmem>>, vector<1x128xf32>
    %c0_22 = arith.constant 0 : index
    %c0_23 = arith.constant 0 : index
    %51 = vector.load %arg5[%c0_22, %c0_23] : memref<1x128xf32, #tpu.memory_space<vmem>>, vector<1x128xf32>
    %cst_24 = arith.constant dense<0.000000e+00> : vector<32x128xf32>
    %52 = tpu.matmul %49, %0, %cst_24 {dimension_numbers = #tpu.dot_dimension_numbers<[1], [0], [0], [1], [0, 0, 1, 1], [], []>} : vector<32x128xf32>, vector<128x128xf32>, vector<32x128xf32> -> vector<32x128xf32>
    %cst_25 = arith.constant dense<0.000000e+00> : vector<128xf32>
    %53 = vector.multi_reduction <add>, %52, %cst_25 [0] : vector<32x128xf32> to vector<128xf32>
    %54 = vector.shape_cast %53 : vector<128xf32> to vector<1x128xf32>
    %55 = arith.mulf %49, %49 : vector<32x128xf32>
    %cst_26 = arith.constant dense<0.000000e+00> : vector<32x128xf32>
    %56 = tpu.matmul %55, %0, %cst_26 {dimension_numbers = #tpu.dot_dimension_numbers<[1], [0], [0], [1], [0, 0, 1, 1], [], []>} : vector<32x128xf32>, vector<128x128xf32>, vector<32x128xf32> -> vector<32x128xf32>
    %cst_27 = arith.constant dense<0.000000e+00> : vector<128xf32>
    %57 = vector.multi_reduction <add>, %56, %cst_27 [0] : vector<32x128xf32> to vector<128xf32>
    %58 = vector.shape_cast %57 : vector<128xf32> to vector<1x128xf32>
    %cst_28 = arith.constant 0.001953125 : f32
    %59 = vector.broadcast %cst_28 : f32 to vector<1x128xf32>
    %60 = arith.mulf %54, %59 : vector<1x128xf32>
    %cst_29 = arith.constant 0.001953125 : f32
    %61 = vector.broadcast %cst_29 : f32 to vector<1x128xf32>
    %62 = arith.mulf %58, %61 : vector<1x128xf32>
    %63 = arith.mulf %60, %60 : vector<1x128xf32>
    %64 = arith.subf %62, %63 : vector<1x128xf32>
    %cst_30 = arith.constant 9.99999974E-6 : f32
    %65 = vector.broadcast %cst_30 : f32 to vector<1x128xf32>
    %66 = arith.addf %64, %65 : vector<1x128xf32>
    %67 = math.rsqrt %66 : vector<1x128xf32>
    %68 = arith.mulf %50, %67 : vector<1x128xf32>
    %69 = arith.mulf %60, %68 : vector<1x128xf32>
    %70 = arith.subf %51, %69 : vector<1x128xf32>
    %71 = vector.broadcast %68 : vector<1x128xf32> to vector<32x128xf32>
    %72 = arith.mulf %49, %71 : vector<32x128xf32>
    %73 = vector.broadcast %70 : vector<1x128xf32> to vector<32x128xf32>
    %74 = arith.addf %72, %73 : vector<32x128xf32>
    %cst_31 = arith.constant 0.000000e+00 : f32
    %75 = vector.broadcast %cst_31 : f32 to vector<32x128xf32>
    %76 = arith.maximumf %74, %75 : vector<32x128xf32>
    %c0_32 = arith.constant 0 : index
    %c0_33 = arith.constant 0 : index
    %77 = vector.load %arg7[%c0_32, %c0_33] : memref<1x128xf32, #tpu.memory_space<vmem>>, vector<1x128xf32>
    %78 = tpu.iota {dimensions = array<i32: 0>} : vector<32x128xi32>
    %c16_i32_34 = arith.constant 16 : i32
    %c0_i32_35 = arith.constant 0 : i32
    %79 = arith.cmpi eq, %c16_i32_34, %c0_i32_35 : i32
    %c1_i32_36 = arith.constant 1 : i32
    %80 = arith.select %79, %c1_i32_36, %c16_i32_34 : i32
    %81 = vector.broadcast %80 : i32 to vector<32x128xi32>
    %82 = arith.remsi %78, %81 : vector<32x128xi32>
    %c0_i32_37 = arith.constant 0 : i32
    %83 = vector.broadcast %c0_i32_37 : i32 to vector<32x128xi32>
    %84 = arith.cmpi ne, %82, %83 : vector<32x128xi32>
    %c0_i32_38 = arith.constant 0 : i32
    %85 = vector.broadcast %c0_i32_38 : i32 to vector<32x128xi32>
    %86 = arith.cmpi slt, %82, %85 : vector<32x128xi32>
    %c0_i32_39 = arith.constant 0 : i32
    %87 = arith.cmpi slt, %80, %c0_i32_39 : i32
    %88 = vector.broadcast %87 : i1 to vector<32x128xi1>
    %89 = vector.broadcast %88 : vector<32x128xi1> to vector<32x128xi1>
    %90 = arith.xori %86, %89 : vector<32x128xi1>
    %91 = arith.andi %90, %84 : vector<32x128xi1>
    %92 = vector.broadcast %80 : i32 to vector<32x128xi32>
    %93 = arith.addi %82, %92 : vector<32x128xi32>
    %94 = arith.select %91, %93, %82 : vector<32x128xi1>, vector<32x128xi32>
    %c0_i32_40 = arith.constant 0 : i32
    %95 = vector.broadcast %c0_i32_40 : i32 to vector<32x128xi32>
    %96 = arith.cmpi eq, %94, %95 : vector<32x128xi32>
    %97 = vector.extract_strided_slice %76 {offsets = [31, 0], sizes = [1, 128], strides = [1, 1]} : vector<32x128xf32> to vector<1x128xf32>
    %98 = vector.extract_strided_slice %76 {offsets = [0, 0], sizes = [31, 128], strides = [1, 1]} : vector<32x128xf32> to vector<31x128xf32>
    %99 = tpu.concatenate %97, %98 in 0 : vector<1x128xf32>, vector<31x128xf32> -> vector<32x128xf32>
    %cst_41 = arith.constant 0.000000e+00 : f32
    %100 = vector.broadcast %cst_41 : f32 to vector<32x128xf32>
    %101 = arith.select %96, %100, %99 : vector<32x128xi1>, vector<32x128xf32>
    %c15_i32_42 = arith.constant 15 : i32
    %102 = vector.broadcast %c15_i32_42 : i32 to vector<32x128xi32>
    %103 = arith.cmpi eq, %94, %102 : vector<32x128xi32>
    %104 = vector.extract_strided_slice %76 {offsets = [1, 0], sizes = [31, 128], strides = [1, 1]} : vector<32x128xf32> to vector<31x128xf32>
    %105 = vector.extract_strided_slice %76 {offsets = [0, 0], sizes = [1, 128], strides = [1, 1]} : vector<32x128xf32> to vector<1x128xf32>
    %106 = tpu.concatenate %104, %105 in 0 : vector<31x128xf32>, vector<1x128xf32> -> vector<32x128xf32>
    %cst_43 = arith.constant 0.000000e+00 : f32
    %107 = vector.broadcast %cst_43 : f32 to vector<32x128xf32>
    %108 = arith.select %103, %107, %106 : vector<32x128xi1>, vector<32x128xf32>
    %109 = arith.truncf %101 : vector<32x128xf32> to vector<32x128xbf16>
    %c0_44 = arith.constant 0 : index
    %c0_45 = arith.constant 0 : index
    %c0_46 = arith.constant 0 : index
    %110 = vector.load %arg6[%c0_44, %c0_45, %c0_46] : memref<3x128x128xbf16, #tpu.memory_space<vmem>>, vector<1x128x128xbf16>
    %111 = vector.shape_cast %110 : vector<1x128x128xbf16> to vector<128x128xbf16>
    %cst_47 = arith.constant dense<0.000000e+00> : vector<32x128xf32>
    %112 = tpu.matmul %109, %111, %cst_47 {dimension_numbers = #tpu.dot_dimension_numbers<[1], [0], [0], [1], [0, 0, 1, 1], [], []>} : vector<32x128xbf16>, vector<128x128xbf16>, vector<32x128xf32> -> vector<32x128xf32>
    %113 = arith.truncf %76 : vector<32x128xf32> to vector<32x128xbf16>
    %c1_48 = arith.constant 1 : index
    %c0_49 = arith.constant 0 : index
    %c0_50 = arith.constant 0 : index
    %114 = vector.load %arg6[%c1_48, %c0_49, %c0_50] : memref<3x128x128xbf16, #tpu.memory_space<vmem>>, vector<1x128x128xbf16>
    %115 = vector.shape_cast %114 : vector<1x128x128xbf16> to vector<128x128xbf16>
    %cst_51 = arith.constant dense<0.000000e+00> : vector<32x128xf32>
    %116 = tpu.matmul %113, %115, %cst_51 {dimension_numbers = #tpu.dot_dimension_numbers<[1], [0], [0], [1], [0, 0, 1, 1], [], []>} : vector<32x128xbf16>, vector<128x128xbf16>, vector<32x128xf32> -> vector<32x128xf32>
    %117 = arith.addf %112, %116 : vector<32x128xf32>
    %118 = arith.truncf %108 : vector<32x128xf32> to vector<32x128xbf16>
    %c2_52 = arith.constant 2 : index
    %c0_53 = arith.constant 0 : index
    %c0_54 = arith.constant 0 : index
    %119 = vector.load %arg6[%c2_52, %c0_53, %c0_54] : memref<3x128x128xbf16, #tpu.memory_space<vmem>>, vector<1x128x128xbf16>
    %120 = vector.shape_cast %119 : vector<1x128x128xbf16> to vector<128x128xbf16>
    %cst_55 = arith.constant dense<0.000000e+00> : vector<32x128xf32>
    %121 = tpu.matmul %118, %120, %cst_55 {dimension_numbers = #tpu.dot_dimension_numbers<[1], [0], [0], [1], [0, 0, 1, 1], [], []>} : vector<32x128xbf16>, vector<128x128xbf16>, vector<32x128xf32> -> vector<32x128xf32>
    %122 = arith.addf %117, %121 : vector<32x128xf32>
    %123 = vector.broadcast %77 : vector<1x128xf32> to vector<32x128xf32>
    %124 = arith.addf %122, %123 : vector<32x128xf32>
    %c0_56 = arith.constant 0 : index
    %c0_57 = arith.constant 0 : index
    %125 = vector.load %arg8[%c0_56, %c0_57] : memref<1x128xf32, #tpu.memory_space<vmem>>, vector<1x128xf32>
    %c0_58 = arith.constant 0 : index
    %c0_59 = arith.constant 0 : index
    %126 = vector.load %arg9[%c0_58, %c0_59] : memref<1x128xf32, #tpu.memory_space<vmem>>, vector<1x128xf32>
    %cst_60 = arith.constant dense<0.000000e+00> : vector<32x128xf32>
    %127 = tpu.matmul %124, %0, %cst_60 {dimension_numbers = #tpu.dot_dimension_numbers<[1], [0], [0], [1], [0, 0, 1, 1], [], []>} : vector<32x128xf32>, vector<128x128xf32>, vector<32x128xf32> -> vector<32x128xf32>
    %cst_61 = arith.constant dense<0.000000e+00> : vector<128xf32>
    %128 = vector.multi_reduction <add>, %127, %cst_61 [0] : vector<32x128xf32> to vector<128xf32>
    %129 = vector.shape_cast %128 : vector<128xf32> to vector<1x128xf32>
    %130 = arith.mulf %124, %124 : vector<32x128xf32>
    %cst_62 = arith.constant dense<0.000000e+00> : vector<32x128xf32>
    %131 = tpu.matmul %130, %0, %cst_62 {dimension_numbers = #tpu.dot_dimension_numbers<[1], [0], [0], [1], [0, 0, 1, 1], [], []>} : vector<32x128xf32>, vector<128x128xf32>, vector<32x128xf32> -> vector<32x128xf32>
    %cst_63 = arith.constant dense<0.000000e+00> : vector<128xf32>
    %132 = vector.multi_reduction <add>, %131, %cst_63 [0] : vector<32x128xf32> to vector<128xf32>
    %133 = vector.shape_cast %132 : vector<128xf32> to vector<1x128xf32>
    %cst_64 = arith.constant 0.001953125 : f32
    %134 = vector.broadcast %cst_64 : f32 to vector<1x128xf32>
    %135 = arith.mulf %129, %134 : vector<1x128xf32>
    %cst_65 = arith.constant 0.001953125 : f32
    %136 = vector.broadcast %cst_65 : f32 to vector<1x128xf32>
    %137 = arith.mulf %133, %136 : vector<1x128xf32>
    %138 = arith.mulf %135, %135 : vector<1x128xf32>
    %139 = arith.subf %137, %138 : vector<1x128xf32>
    %cst_66 = arith.constant 9.99999974E-6 : f32
    %140 = vector.broadcast %cst_66 : f32 to vector<1x128xf32>
    %141 = arith.addf %139, %140 : vector<1x128xf32>
    %142 = math.rsqrt %141 : vector<1x128xf32>
    %143 = arith.mulf %125, %142 : vector<1x128xf32>
    %144 = arith.mulf %135, %143 : vector<1x128xf32>
    %145 = arith.subf %126, %144 : vector<1x128xf32>
    %146 = vector.broadcast %143 : vector<1x128xf32> to vector<32x128xf32>
    %147 = arith.mulf %124, %146 : vector<32x128xf32>
    %148 = vector.broadcast %145 : vector<1x128xf32> to vector<32x128xf32>
    %149 = arith.addf %147, %148 : vector<32x128xf32>
    %cst_67 = arith.constant 0.000000e+00 : f32
    %150 = vector.broadcast %cst_67 : f32 to vector<32x128xf32>
    %151 = arith.maximumf %149, %150 : vector<32x128xf32>
    %c0_68 = arith.constant 0 : index
    %c0_69 = arith.constant 0 : index
    %152 = vector.load %arg11[%c0_68, %c0_69] : memref<32x128xf32, #tpu.memory_space<vmem>>, vector<32x128xf32>
    tpu.vector_store %arg11[%c0_68, %c0_69], %151 {strides = array<i32>} : memref<32x128xf32, #tpu.memory_space<vmem>>, vector<32x128xf32>,
    return
  }
  func.func @transform_0(%arg0: i32) -> (i32, i32) {
    %c0_i32 = arith.constant 0 : i32
    %c0_i32_0 = arith.constant 0 : i32
    %c0_i32_1 = arith.constant 0 : i32
    return %c0_i32, %c0_i32_0 : i32, i32
  }
  func.func @transform_1(%arg0: i32) -> (i32, i32, i32) {
    %c0_i32 = arith.constant 0 : i32
    %c0_i32_0 = arith.constant 0 : i32
    %c0_i32_1 = arith.constant 0 : i32
    %c0_i32_2 = arith.constant 0 : i32
    return %c0_i32, %c0_i32_0, %c0_i32_1 : i32, i32, i32
  }
  func.func @transform_2(%arg0: i32) -> (i32, i32) {
    %c0_i32 = arith.constant 0 : i32
    %c0_i32_0 = arith.constant 0 : i32
    %c0_i32_1 = arith.constant 0 : i32
    return %c0_i32, %c0_i32_0 : i32, i32
  }
  func.func @transform_3(%arg0: i32) -> (i32, i32) {
    %c0_i32 = arith.constant 0 : i32
    %c0_i32_0 = arith.constant 0 : i32
    %c0_i32_1 = arith.constant 0 : i32
    return %c0_i32, %c0_i32_0 : i32, i32
  }
  func.func @transform_4(%arg0: i32) -> (i32, i32) {
    %c0_i32 = arith.constant 0 : i32
    %c0_i32_0 = arith.constant 0 : i32
    %c0_i32_1 = arith.constant 0 : i32
    return %c0_i32, %c0_i32_0 : i32, i32
  }
  func.func @transform_5(%arg0: i32) -> (i32, i32, i32) {
    %c0_i32 = arith.constant 0 : i32
    %c0_i32_0 = arith.constant 0 : i32
    %c0_i32_1 = arith.constant 0 : i32
    %c0_i32_2 = arith.constant 0 : i32
    return %c0_i32, %c0_i32_0, %c0_i32_1 : i32, i32, i32
  }
  func.func @transform_6(%arg0: i32) -> (i32, i32) {
    %c0_i32 = arith.constant 0 : i32
    %c0_i32_0 = arith.constant 0 : i32
    %c0_i32_1 = arith.constant 0 : i32
    return %c0_i32, %c0_i32_0 : i32, i32
  }
  func.func @transform_7(%arg0: i32) -> (i32, i32) {
    %c0_i32 = arith.constant 0 : i32
    %c0_i32_0 = arith.constant 0 : i32
    %c0_i32_1 = arith.constant 0 : i32
    return %c0_i32, %c0_i32_0 : i32, i32
  }
  func.func @transform_8(%arg0: i32) -> (i32, i32) {
    %c0_i32 = arith.constant 0 : i32
    %c0_i32_0 = arith.constant 0 : i32
    %c0_i32_1 = arith.constant 0 : i32
    return %c0_i32, %c0_i32_0 : i32, i32
  }
  func.func @transform_9(%arg0: i32) -> (i32, i32) {
    %c0_i32 = arith.constant 0 : i32
    %c0_i32_0 = arith.constant 0 : i32
    %c0_i32_1 = arith.constant 0 : i32
    return %c0_i32, %c0_i32_0 : i32, i32
  }
  func.func @transform_10(%arg0: i32) -> (i32, i32) {
    %c0_i32 = arith.constant 0 : i32
    %c0_i32_0 = arith.constant 0 : i32
    %c0_i32_1 = arith.constant 0 : i32
    return %c0_i32, %c0_i32_0 : i32, i32
  }
}

</mosaic_0001>

<llo_original>
// kernel: tpu_custom_call.1
$region0: #{tpu_custom_call.1}
  #allocation0 [shape = 'u32[]', space=smem, size = 0x4, offset = 0x4, fixed_abs, tag = 'smem constant byte address 0x4 - core index']
  #allocation1 [shape = 'u32[144,128]{1,0:T(1,128)}', space=vmem, size = 0x12000, scoped, tag = 'internal scratch']
  %s0 = inlined_call_operand.hbm [shape: f32[32,64], index: 0, kind: input, shape index: {}]
  %s1 = inlined_call_operand.hbm [shape: bf16[3,64,128], index: 1, kind: input, shape index: {}]
  %s2 = inlined_call_operand.vmem [shape: f32[1,128], index: 2, kind: input, shape index: {}]
  %s3 = inlined_call_operand.vmem [shape: f32[1,128], index: 3, kind: input, shape index: {}]
  %s4 = inlined_call_operand.vmem [shape: f32[1,128], index: 4, kind: input, shape index: {}]
  %s5 = inlined_call_operand.hbm [shape: bf16[3,128,128], index: 5, kind: input, shape index: {}]
  %s6 = inlined_call_operand.vmem [shape: f32[1,128], index: 6, kind: input, shape index: {}]
  %s7 = inlined_call_operand.vmem [shape: f32[1,128], index: 7, kind: input, shape index: {}]
  %s8 = inlined_call_operand.vmem [shape: f32[1,128], index: 8, kind: input, shape index: {}]
  %s9 = inlined_call_operand.hbm [shape: f32[128,128], index: 9, kind: input, shape index: {}]
  %s10 = inlined_call_operand.hbm [shape: f32[32,128], index: 10, kind: output, shape index: {}]
  %s11 = sld [smem:[#allocation0]]
  $region66: #{tpu_custom_call.1} parent=0
    _
  %s13 = ssub.s32 1, %s11
  %s14 = scalar_select 0, %s13, %s11
  $region1: #{tpu_custom_call.1} parent=0
    #allocation2 [shape = 'u8[16384]{0}', space=vmem, size = 0x4000, scoped, tag = 'input window, operand 0, single buffered']
    #allocation3 [shape = 's32[1]{0}', space=sflag, size = 0x4, scoped, tag = 'scoped memory for tpu_custom_call.1']
    #allocation4 [shape = 's32[1]{0}', space=sflag, size = 0x4, scoped, tag = 'scoped memory for tpu_custom_call.1']
    #allocation5 [shape = 'u8[49152]{0}', space=vmem, size = 0xc000, scoped, tag = 'input window, operand 1, single buffered']
    #allocation6 [shape = 's32[1]{0}', space=sflag, size = 0x4, scoped, tag = 'scoped memory for tpu_custom_call.1']
    #allocation7 [shape = 'u8[98304]{0}', space=vmem, size = 0x18000, scoped, tag = 'input window, operand 5, single buffered']
    #allocation8 [shape = 'u8[65536]{0}', space=vmem, size = 0x10000, scoped, tag = 'input window, operand 9, single buffered']
    #allocation9 [shape = 's32[1]{0}', space=sflag, size = 0x4, scoped, tag = 'scoped memory for tpu_custom_call.1']
    #allocation10 [shape = 'u8[16384]{0}', space=vmem, size = 0x4000, scoped, tag = 'output window, operand 0, single buffered']
    %15 = vsyncpa [#allocation3], 0
    %16 = vsyncpa [#allocation6], 0
    %17 = vsyncpa [#allocation9], 0
    %18 = vsyncpa [#allocation4], 0
    // Predicated region
    $region2: #{tpu_custom_call.1} parent=1 // pred_check
      _
    $region3: #{tpu_custom_call.1} parent=1 // pred_check_branch
      %20 = sbr.rel (0) target = $region5
    $region4: #{tpu_custom_call.1} parent=1 // pred_region
      %s22 = ssub.s32 512, 512
      %23 = vsyncadd [#allocation3], %s22
      %s24 = sshll.u32 [#allocation2], 4
      %s25 = int_to_ptr.vmem [resolvable:$true] %s24
      %30 = dma.hbm_to_vmem [thread:$0]  %s0, 512, %s25, [#allocation3], 128, 128, 8
    $region5: #{tpu_custom_call.1} parent=1 // pred_fallthru
      _
    // Predicated region
    $region6: #{tpu_custom_call.1} parent=1 // pred_check
      _
    $region7: #{tpu_custom_call.1} parent=1 // pred_check_branch
      %32 = sbr.rel (0) target = $region9
    $region8: #{tpu_custom_call.1} parent=1 // pred_region
      %s34 = ssub.s32 1536, 1536
      %35 = vsyncadd [#allocation6], %s34
      %s36 = sshll.u32 [#allocation5], 4
      %s37 = int_to_ptr.vmem [resolvable:$true] %s36
      %42 = dma.hbm_to_vmem [thread:$0]  %s1, 1536, %s37, [#allocation6], 64, 64, 4
    $region9: #{tpu_custom_call.1} parent=1 // pred_fallthru
      _
    // Predicated region
    $region10: #{tpu_custom_call.1} parent=1 // pred_check
      _
    $region11: #{tpu_custom_call.1} parent=1 // pred_check_branch
      %44 = sbr.rel (0) target = $region13
    $region12: #{tpu_custom_call.1} parent=1 // pred_region
      _
    $region13: #{tpu_custom_call.1} parent=1 // pred_fallthru
      _
    // Predicated region
    $region14: #{tpu_custom_call.1} parent=1 // pred_check
      _
    $region15: #{tpu_custom_call.1} parent=1 // pred_check_branch
      %46 = sbr.rel (0) target = $region17
    $region16: #{tpu_custom_call.1} parent=1 // pred_region
      _
    $region17: #{tpu_custom_call.1} parent=1 // pred_fallthru
      _
    // Predicated region
    $region18: #{tpu_custom_call.1} parent=1 // pred_check
      _
    $region19: #{tpu_custom_call.1} parent=1 // pred_check_branch
      %48 = sbr.rel (0) target = $region21
    $region20: #{tpu_custom_call.1} parent=1 // pred_region
      _
    $region21: #{tpu_custom_call.1} parent=1 // pred_fallthru
      _
    // Predicated region
    $region22: #{tpu_custom_call.1} parent=1 // pred_check
      _
    $region23: #{tpu_custom_call.1} parent=1 // pred_check_branch
      %50 = sbr.rel (0) target = $region25
    $region24: #{tpu_custom_call.1} parent=1 // pred_region
      %s52 = ssub.s32 3072, 3072
      %53 = vsyncadd [#allocation6], %s52
      %s54 = sshll.u32 [#allocation7], 4
      %s55 = int_to_ptr.vmem [resolvable:$true] %s54
      %60 = dma.hbm_to_vmem [thread:$0]  %s5, 3072, %s55, [#allocation6], 64, 64, 4
    $region25: #{tpu_custom_call.1} parent=1 // pred_fallthru
      _
    // Predicated region
    $region26: #{tpu_custom_call.1} parent=1 // pred_check
      _
    $region27: #{tpu_custom_call.1} parent=1 // pred_check_branch
      %62 = sbr.rel (0) target = $region29
    $region28: #{tpu_custom_call.1} parent=1 // pred_region
      _
    $region29: #{tpu_custom_call.1} parent=1 // pred_fallthru
      _
    // Predicated region
    $region30: #{tpu_custom_call.1} parent=1 // pred_check
      _
    $region31: #{tpu_custom_call.1} parent=1 // pred_check_branch
      %64 = sbr.rel (0) target = $region33
    $region32: #{tpu_custom_call.1} parent=1 // pred_region
      _
    $region33: #{tpu_custom_call.1} parent=1 // pred_fallthru
      _
    // Predicated region
    $region34: #{tpu_custom_call.1} parent=1 // pred_check
      _
    $region35: #{tpu_custom_call.1} parent=1 // pred_check_branch
      %66 = sbr.rel (0) target = $region37
    $region36: #{tpu_custom_call.1} parent=1 // pred_region
      _
    $region37: #{tpu_custom_call.1} parent=1 // pred_fallthru
      _
    // Predicated region
    $region38: #{tpu_custom_call.1} parent=1 // pred_check
      _
    $region39: #{tpu_custom_call.1} parent=1 // pred_check_branch
      %68 = sbr.rel (0) target = $region41
    $region40: #{tpu_custom_call.1} parent=1 // pred_region
      %s70 = ssub.s32 2048, 2048
      %71 = vsyncadd [#allocation9], %s70
      %s72 = sshll.u32 [#allocation8], 4
      %s73 = int_to_ptr.vmem [resolvable:$true] %s72
      %78 = dma.hbm_to_vmem [thread:$0]  %s9, 2048, %s73, [#allocation9], 128, 128, 8
    $region41: #{tpu_custom_call.1} parent=1 // pred_fallthru
      _
    // Predicated region
    $region42: #{tpu_custom_call.1} parent=1 // pred_check
      _
    $region43: #{tpu_custom_call.1} parent=1 // pred_check_branch
      %80 = sbr.rel (0) target = $region45
    $region44: #{tpu_custom_call.1} parent=1 // pred_region
      %81 = dma.done [#allocation3], 512
    $region45: #{tpu_custom_call.1} parent=1 // pred_fallthru
      _
    // Predicated region
    $region46: #{tpu_custom_call.1} parent=1 // pred_check
      _
    $region47: #{tpu_custom_call.1} parent=1 // pred_check_branch
      %83 = sbr.rel (0) target = $region49
    $region48: #{tpu_custom_call.1} parent=1 // pred_region
      %84 = dma.done [#allocation6], 1536
    $region49: #{tpu_custom_call.1} parent=1 // pred_fallthru
      _
    // Predicated region
    $region50: #{tpu_custom_call.1} parent=1 // pred_check
      _
    $region51: #{tpu_custom_call.1} parent=1 // pred_check_branch
      %86 = sbr.rel (0) target = $region53
    $region52: #{tpu_custom_call.1} parent=1 // pred_region
      %87 = dma.done [#allocation6], 3072
    $region53: #{tpu_custom_call.1} parent=1 // pred_fallthru
      _
    // Predicated region
    $region54: #{tpu_custom_call.1} parent=1 // pred_check
      _
    $region55: #{tpu_custom_call.1} parent=1 // pred_check_branch
      %89 = sbr.rel (0) target = $region57
    $region56: #{tpu_custom_call.1} parent=1 // pred_region
      %90 = dma.done [#allocation9], 2048
    $region57: #{tpu_custom_call.1} parent=1 // pred_fallthru
      _
    %v92 = vld [vmem:[#allocation8] sm:$0xff]
    %v93 = vld [vmem:[#allocation8 + $0x8] sm:$0xff]
    %v94 = vld [vmem:[#allocation8 + $0x10] sm:$0xff]
    %v95 = vld [vmem:[#allocation8 + $0x18] sm:$0xff]
    %v96 = vld [vmem:[#allocation8 + $0x20] sm:$0xff]
    %v97 = vld [vmem:[#allocation8 + $0x28] sm:$0xff]
    %v98 = vld [vmem:[#allocation8 + $0x30] sm:$0xff]
    %v99 = vld [vmem:[#allocation8 + $0x38] sm:$0xff]
    %v100 = vld [vmem:[#allocation8 + $0x40] sm:$0xff]
    %v101 = vld [vmem:[#allocation8 + $0x48] sm:$0xff]
    %v102 = vld [vmem:[#allocation8 + $0x50] sm:$0xff]
    %v103 = vld [vmem:[#allocation8 + $0x58] sm:$0xff]
    %v104 = vld [vmem:[#allocation8 + $0x60] sm:$0xff]
    %v105 = vld [vmem:[#allocation8 + $0x68] sm:$0xff]
    %v106 = vld [vmem:[#allocation8 + $0x70] sm:$0xff]
    %v107 = vld [vmem:[#allocation8 + $0x78] sm:$0xff]
    %v108 = vld [vmem:[#allocation2] sm:$0xff]
    %v109 = vld [vmem:[#allocation2 + $0x8] sm:$0xff]
    %v110 = vld [vmem:[#allocation2 + $0x10] sm:$0xff]
    %v111 = vld [vmem:[#allocation2 + $0x18] sm:$0xff]
    %v112 = vld [vmem:[%s2] sm:$0x1]
    %v113 = vlaneseq
    %v114 = vshrl.u32 %v113, 7
    %v115 = vadd.s32 %v114, 8
    %v116 = vadd.s32 %v114, 16
    %v117 = vadd.s32 %v114, 24
    %vm118 = vcmp.lt.s32.totalorder %v114, 0
    %v119 = vsub.s32 0, %v114
    %v120 = vsel %vm118, %v119, %v114
    %v121 = vshrl.u32 %v120, 4
    %v122 = vand.u32 %v120, 15
    %v123 = vsub.s32 0, %v122
    %v124 = vsel %vm118, %v123, %v122
    %vm125 = vcmp.lt.s32.totalorder %v115, 0
    %v126 = vsub.s32 0, %v115
    %v127 = vsel %vm125, %v126, %v115
    %v128 = vshrl.u32 %v127, 4
    %v129 = vand.u32 %v127, 15
    %v130 = vsub.s32 0, %v129
    %v131 = vsel %vm125, %v130, %v129
    %vm132 = vcmp.lt.s32.totalorder %v116, 0
    %v133 = vsub.s32 0, %v116
    %v134 = vsel %vm132, %v133, %v116
    %v135 = vshrl.u32 %v134, 4
    %v136 = vand.u32 %v134, 15
    %v137 = vsub.s32 0, %v136
    %v138 = vsel %vm132, %v137, %v136
    %vm139 = vcmp.lt.s32.totalorder %v117, 0
    %v140 = vsub.s32 0, %v117
    %v141 = vsel %vm139, %v140, %v117
    %v142 = vshrl.u32 %v141, 4
    %v143 = vand.u32 %v141, 15
    %v144 = vsub.s32 0, %v143
    %v145 = vsel %vm139, %v144, %v143
    %vm146 = vcmp.ne.s32.totalorder %v124, 0
    %vm147 = vcmp.ne.s32.totalorder %v131, 0
    %vm148 = vcmp.ne.s32.totalorder %v138, 0
    %vm149 = vcmp.ne.s32.totalorder %v145, 0
    %vm150 = vcmp.lt.s32.totalorder %v124, 0
    %vm151 = vcmp.lt.s32.totalorder %v131, 0
    %vm152 = vcmp.lt.s32.totalorder %v138, 0
    %vm153 = vcmp.lt.s32.totalorder %v145, 0
    %vm154 = vmand %vm150, %vm146
    %vm155 = vmand %vm151, %vm147
    %vm156 = vmand %vm152, %vm148
    %vm157 = vmand %vm153, %vm149
    %v158 = vadd.s32 %v124, 16
    %v159 = vadd.s32 %v131, 16
    %v160 = vadd.s32 %v138, 16
    %v161 = vadd.s32 %v145, 16
    %v162 = vsel %vm154, %v158, %v124
    %v163 = vsel %vm155, %v159, %v131
    %v164 = vsel %vm156, %v160, %v138
    %v165 = vsel %vm157, %v161, %v145
    %vm166 = vcmp.eq.s32.totalorder %v162, 0
    %vm167 = vcmp.eq.s32.totalorder %v163, 0
    %vm168 = vcmp.eq.s32.totalorder %v164, 0
    %vm169 = vcmp.eq.s32.totalorder %v165, 0
    %v171 = vrot.slane %v111, 7
    %vm176 = vcmask 1040384
    %v177 = vrot.slane %v108, 7
    %v178 = vrot.slane %v109, 7
    %v179 = vsel %vm176, %v177, %v178
    %v180 = vrot.slane %v110, 7
    %v181 = vsel %vm176, %v178, %v180
    %v182 = vsel %vm176, %v180, %v171
    %v187 = vsel %vm176, %v171, %v177
    %v188 = vsel %vm166, 0.0, %v187
    %v189 = vsel %vm167, 0.0, %v179
    %v190 = vsel %vm168, 0.0, %v181
    %v191 = vsel %vm169, 0.0, %v182
    %vm192 = vcmp.eq.s32.totalorder %v162, 15
    %vm193 = vcmp.eq.s32.totalorder %v163, 15
    %vm194 = vcmp.eq.s32.totalorder %v164, 15
    %vm195 = vcmp.eq.s32.totalorder %v165, 15
    %vm196 = vcmask 1046528
    %v197 = vrot.slane %v108, 1
    %v198 = vrot.slane %v109, 1
    %v199 = vsel %vm196, %v197, %v198
    %v200 = vrot.slane %v110, 1
    %v201 = vsel %vm196, %v198, %v200
    %v202 = vrot.slane %v111, 1
    %v203 = vsel %vm196, %v200, %v202
    %v209 = vsel %vm196, %v202, %v197
    %v210 = vsel %vm192, 0.0, %v199
    %v211 = vsel %vm193, 0.0, %v201
    %v212 = vsel %vm194, 0.0, %v203
    %v213 = vsel %vm195, 0.0, %v209
    %v214 = vpack.c.bf16 %v189, %v188
    %v215 = vpack.c.bf16 %v191, %v190
    %v216 = vld [vmem:[#allocation5] sm:$0xf]
    %v217 = vld [vmem:[#allocation5 + $0x4] sm:$0xf]
    %v218 = vld [vmem:[#allocation5 + $0x8] sm:$0xf]
    %v219 = vld [vmem:[#allocation5 + $0xc] sm:$0xf]
    %v220 = vld [vmem:[#allocation5 + $0x10] sm:$0xf]
    %v221 = vld [vmem:[#allocation5 + $0x14] sm:$0xf]
    %v222 = vld [vmem:[#allocation5 + $0x18] sm:$0xf]
    %v223 = vld [vmem:[#allocation5 + $0x1c] sm:$0xf]
    %v224 = vpack.c.bf16 %v109, %v108
    %v225 = vpack.c.bf16 %v111, %v110
    %s226 = scalar_lea.vmem [#allocation5], 32
    %v227 = vld [vmem:[%s226] sm:$0xf]
    %v228 = vld [vmem:[%s226 + $0x4] sm:$0xf]
    %v229 = vld [vmem:[%s226 + $0x8] sm:$0xf]
    %v230 = vld [vmem:[%s226 + $0xc] sm:$0xf]
    %v231 = vld [vmem:[%s226 + $0x10] sm:$0xf]
    %v232 = vld [vmem:[%s226 + $0x14] sm:$0xf]
    %v233 = vld [vmem:[%s226 + $0x18] sm:$0xf]
    %v234 = vld [vmem:[%s226 + $0x1c] sm:$0xf]
    %v243 = vunpack.c.l.b16 %v227
    %v244 = vunpack.c.l.b16 %v228
    %v245 = vunpack.c.l.b16 %v229
    %v246 = vunpack.c.l.b16 %v230
    %v247 = vunpack.c.l.b16 %v231
    %v248 = vunpack.c.l.b16 %v232
    %v249 = vunpack.c.l.b16 %v233
    %v250 = vunpack.c.l.b16 %v234
    %v251 = vpack.c.b16 %v244, %v243
    %v252 = vpack.c.b16 %v246, %v245
    %v253 = vpack.c.b16 %v248, %v247
    %v254 = vpack.c.b16 %v250, %v249
    %vm259 = vcmask 523264
    %v261 = vsel %vm259, %v224, 0
    %v264 = vsel %vm259, %v225, 0
    %266 = vmatprep.subr.bf16.mxu0 0
    %267 = vmatpush1.bf16.msra.mxu0 0
    %268 = vmatprep.subr.bf16.mxu0 0
    %269 = vmatpush1.bf16.msra.mxu0 0
    %270 = vmatprep.subr.bf16.mxu0 0
    %271 = vmatpush1.bf16.msra.mxu0 0
    %272 = vmatprep.subr.bf16.mxu0 0
    %273 = vmatpush1.bf16.msra.mxu0 0
    %274 = vmatprep.subr.bf16.mxu0 0
    %275 = vmatpush1.bf16.msra.mxu0 %v254
    %276 = vmatprep.subr.bf16.mxu0 0
    %277 = vmatpush1.bf16.msra.mxu0 %v253
    %278 = vmatprep.subr.bf16.mxu0 0
    %279 = vmatpush1.bf16.msra.mxu0 %v252
    %280 = vmatprep.subr.bf16.mxu0 0
    %281 = vmatpush1.bf16.msra.mxu0 %v251
    %282 = vmatprep.subr.bf16.mxu0 0
    %283 = vmatpush2.bf16.msra.mxu0 0
    %284 = vmatprep.subr.bf16.mxu0 0
    %285 = vmatpush2.bf16.msra.mxu0 0
    %286 = vmatprep.subr.bf16.mxu0 0
    %287 = vmatpush2.bf16.msra.mxu0 0
    %288 = vmatprep.subr.bf16.mxu0 0
    %289 = vmatpush2.bf16.msra.mxu0 0
    %290 = vmatprep.subr.bf16.mxu0 0
    %291 = vmatpush2.bf16.msra.mxu0 0
    %292 = vmatprep.subr.bf16.mxu0 0
    %293 = vmatpush2.bf16.msra.mxu0 0
    %294 = vmatprep.subr.bf16.mxu0 0
    %295 = vmatpush2.bf16.msra.mxu0 0
    %296 = vmatprep.subr.bf16.mxu0 0
    %297 = vmatpush2.bf16.msra.mxu0 0
    %298 = vmatprep.mubr.bf16.mxu0 0
    %299 = vmatmul.mubr.bf16.gmra.mxu0 %v261
    %v300 = vpop.f32.mrf.mxu0
    %v301 = vadd.f32 0.0, %v300
    %v302 = vpop.f32.mrf.mxu0
    %v303 = vpop.f32.mrf.mxu0
    %v304 = vadd.f32 0.0, %v303
    %v305 = vpop.f32.mrf.mxu0
    %306 = vmatprep.mubr.bf16.mxu0 0
    %307 = vmatmul.mubr.bf16.gmra.mxu0 %v264
    %v308 = vpop.f32.mrf.mxu0
    %v309 = vadd.f32 0.0, %v308
    %v310 = vpop.f32.mrf.mxu0
    %v311 = vpop.f32.mrf.mxu0
    %v312 = vadd.f32 0.0, %v311
    %v313 = vpop.f32.mrf.mxu0
    %314 = vdwg.mxu0
    %v323 = vunpack.c.l.b16 %v216
    %v324 = vunpack.c.l.b16 %v217
    %v325 = vunpack.c.l.b16 %v218
    %v326 = vunpack.c.l.b16 %v219
    %v327 = vunpack.c.l.b16 %v220
    %v328 = vunpack.c.l.b16 %v221
    %v329 = vunpack.c.l.b16 %v222
    %v330 = vunpack.c.l.b16 %v223
    %v331 = vpack.c.b16 %v324, %v323
    %v332 = vpack.c.b16 %v326, %v325
    %v333 = vpack.c.b16 %v328, %v327
    %v334 = vpack.c.b16 %v330, %v329
    %v340 = vsel %vm259, %v214, 0
    %v343 = vsel %vm259, %v215, 0
    %345 = vmatprep.subr.bf16.mxu0 0
    %346 = vmatpush1.bf16.msra.mxu0 0
    %347 = vmatprep.subr.bf16.mxu0 0
    %348 = vmatpush1.bf16.msra.mxu0 0
    %349 = vmatprep.subr.bf16.mxu0 0
    %350 = vmatpush1.bf16.msra.mxu0 0
    %351 = vmatprep.subr.bf16.mxu0 0
    %352 = vmatpush1.bf16.msra.mxu0 0
    %353 = vmatprep.subr.bf16.mxu0 0
    %354 = vmatpush1.bf16.msra.mxu0 %v334
    %355 = vmatprep.subr.bf16.mxu0 0
    %356 = vmatpush1.bf16.msra.mxu0 %v333
    %357 = vmatprep.subr.bf16.mxu0 0
    %358 = vmatpush1.bf16.msra.mxu0 %v332
    %359 = vmatprep.subr.bf16.mxu0 0
    %360 = vmatpush1.bf16.msra.mxu0 %v331
    %361 = vmatprep.subr.bf16.mxu0 0
    %362 = vmatpush2.bf16.msra.mxu0 0
    %363 = vmatprep.subr.bf16.mxu0 0
    %364 = vmatpush2.bf16.msra.mxu0 0
    %365 = vmatprep.subr.bf16.mxu0 0
    %366 = vmatpush2.bf16.msra.mxu0 0
    %367 = vmatprep.subr.bf16.mxu0 0
    %368 = vmatpush2.bf16.msra.mxu0 0
    %369 = vmatprep.subr.bf16.mxu0 0
    %370 = vmatpush2.bf16.msra.mxu0 0
    %371 = vmatprep.subr.bf16.mxu0 0
    %372 = vmatpush2.bf16.msra.mxu0 0
    %373 = vmatprep.subr.bf16.mxu0 0
    %374 = vmatpush2.bf16.msra.mxu0 0
    %375 = vmatprep.subr.bf16.mxu0 0
    %376 = vmatpush2.bf16.msra.mxu0 0
    %377 = vmatprep.mubr.bf16.mxu0 0
    %378 = vmatmul.mubr.bf16.gmra.mxu0 %v340
    %v379 = vpop.f32.mrf.mxu0
    %v380 = vadd.f32 %v301, %v379
    %v381 = vpop.f32.mrf.mxu0
    %v382 = vpop.f32.mrf.mxu0
    %v383 = vadd.f32 %v304, %v382
    %v384 = vpop.f32.mrf.mxu0
    %385 = vmatprep.mubr.bf16.mxu0 0
    %386 = vmatmul.mubr.bf16.gmra.mxu0 %v343
    %v387 = vpop.f32.mrf.mxu0
    %v388 = vadd.f32 %v309, %v387
    %v389 = vpop.f32.mrf.mxu0
    %v390 = vpop.f32.mrf.mxu0
    %v391 = vadd.f32 %v312, %v390
    %v392 = vpop.f32.mrf.mxu0
    %393 = vdwg.mxu0
    %v394 = vpack.c.bf16 %v211, %v210
    %v395 = vpack.c.bf16 %v213, %v212
    %s396 = scalar_lea.vmem [#allocation5], 64
    %v397 = vld [vmem:[%s396] sm:$0xf]
    %v398 = vld [vmem:[%s396 + $0x4] sm:$0xf]
    %v399 = vld [vmem:[%s396 + $0x8] sm:$0xf]
    %v400 = vld [vmem:[%s396 + $0xc] sm:$0xf]
    %v401 = vld [vmem:[%s396 + $0x10] sm:$0xf]
    %v402 = vld [vmem:[%s396 + $0x14] sm:$0xf]
    %v403 = vld [vmem:[%s396 + $0x18] sm:$0xf]
    %v404 = vld [vmem:[%s396 + $0x1c] sm:$0xf]
    %v413 = vunpack.c.l.b16 %v397
    %v414 = vunpack.c.l.b16 %v398
    %v415 = vunpack.c.l.b16 %v399
    %v416 = vunpack.c.l.b16 %v400
    %v417 = vunpack.c.l.b16 %v401
    %v418 = vunpack.c.l.b16 %v402
    %v419 = vunpack.c.l.b16 %v403
    %v420 = vunpack.c.l.b16 %v404
    %v421 = vpack.c.b16 %v414, %v413
    %v422 = vpack.c.b16 %v416, %v415
    %v423 = vpack.c.b16 %v418, %v417
    %v424 = vpack.c.b16 %v420, %v419
    %v430 = vsel %vm259, %v394, 0
    %v433 = vsel %vm259, %v395, 0
    %435 = vmatprep.subr.bf16.mxu0 0
    %436 = vmatpush1.bf16.msra.mxu0 0
    %437 = vmatprep.subr.bf16.mxu0 0
    %438 = vmatpush1.bf16.msra.mxu0 0
    %439 = vmatprep.subr.bf16.mxu0 0
    %440 = vmatpush1.bf16.msra.mxu0 0
    %441 = vmatprep.subr.bf16.mxu0 0
    %442 = vmatpush1.bf16.msra.mxu0 0
    %443 = vmatprep.subr.bf16.mxu0 0
    %444 = vmatpush1.bf16.msra.mxu0 %v424
    %445 = vmatprep.subr.bf16.mxu0 0
    %446 = vmatpush1.bf16.msra.mxu0 %v423
    %447 = vmatprep.subr.bf16.mxu0 0
    %448 = vmatpush1.bf16.msra.mxu0 %v422
    %449 = vmatprep.subr.bf16.mxu0 0
    %450 = vmatpush1.bf16.msra.mxu0 %v421
    %451 = vmatprep.subr.bf16.mxu0 0
    %452 = vmatpush2.bf16.msra.mxu0 0
    %453 = vmatprep.subr.bf16.mxu0 0
    %454 = vmatpush2.bf16.msra.mxu0 0
    %455 = vmatprep.subr.bf16.mxu0 0
    %456 = vmatpush2.bf16.msra.mxu0 0
    %457 = vmatprep.subr.bf16.mxu0 0
    %458 = vmatpush2.bf16.msra.mxu0 0
    %459 = vmatprep.subr.bf16.mxu0 0
    %460 = vmatpush2.bf16.msra.mxu0 0
    %461 = vmatprep.subr.bf16.mxu0 0
    %462 = vmatpush2.bf16.msra.mxu0 0
    %463 = vmatprep.subr.bf16.mxu0 0
    %464 = vmatpush2.bf16.msra.mxu0 0
    %465 = vmatprep.subr.bf16.mxu0 0
    %466 = vmatpush2.bf16.msra.mxu0 0
    %467 = vmatprep.mubr.bf16.mxu0 0
    %468 = vmatmul.mubr.bf16.gmra.mxu0 %v430
    %v469 = vpop.f32.mrf.mxu0
    %v470 = vadd.f32 0.0, %v469
    %v471 = vpop.f32.mrf.mxu0
    %v472 = vpop.f32.mrf.mxu0
    %v473 = vadd.f32 0.0, %v472
    %v474 = vpop.f32.mrf.mxu0
    %475 = vmatprep.mubr.bf16.mxu0 0
    %476 = vmatmul.mubr.bf16.gmra.mxu0 %v433
    %v477 = vpop.f32.mrf.mxu0
    %v478 = vadd.f32 0.0, %v477
    %v479 = vpop.f32.mrf.mxu0
    %v480 = vpop.f32.mrf.mxu0
    %v481 = vadd.f32 0.0, %v480
    %v482 = vpop.f32.mrf.mxu0
    %483 = vdwg.mxu0
    %v484 = vadd.f32 %v380, %v470
    %v485 = vadd.f32 %v383, %v473
    %v486 = vadd.f32 %v388, %v478
    %v487 = vadd.f32 %v391, %v481
    %v489 = vlaneseq
    %v490 = vshrl.u32 %v489, 7
    %v491 = vsub.s32 0, %v490
    %v492 = vrot.slane %v112, %v491
    %v494 = vadd.f32 %v484, %v492
    %v495 = vadd.f32 %v485, %v492
    %v496 = vadd.f32 %v486, %v492
    %v497 = vadd.f32 %v487, %v492
    %v498 = vld [vmem:[%s3] sm:$0x1]
    %v499 = vld [vmem:[%s4] sm:$0x1]
    %500 = vmatprep.subr.mxu0 0.0
    %501 = vmatpush1.msra.mxu0 %v107
    %502 = vmatprep.subr.mxu0 0.0
    %503 = vmatpush1.msra.mxu0 %v106
    %504 = vmatprep.subr.mxu0 0.0
    %505 = vmatpush1.msra.mxu0 %v105
    %506 = vmatprep.subr.mxu0 0.0
    %507 = vmatpush1.msra.mxu0 %v104
    %508 = vmatprep.subr.mxu0 0.0
    %509 = vmatpush1.msra.mxu0 %v103
    %510 = vmatprep.subr.mxu0 0.0
    %511 = vmatpush1.msra.mxu0 %v102
    %512 = vmatprep.subr.mxu0 0.0
    %513 = vmatpush1.msra.mxu0 %v101
    %514 = vmatprep.subr.mxu0 0.0
    %515 = vmatpush1.msra.mxu0 %v100
    %516 = vmatprep.subr.mxu0 0.0
    %517 = vmatpush1.msra.mxu0 %v99
    %518 = vmatprep.subr.mxu0 0.0
    %519 = vmatpush1.msra.mxu0 %v98
    %520 = vmatprep.subr.mxu0 0.0
    %521 = vmatpush1.msra.mxu0 %v97
    %522 = vmatprep.subr.mxu0 0.0
    %523 = vmatpush1.msra.mxu0 %v96
    %524 = vmatprep.subr.mxu0 0.0
    %525 = vmatpush1.msra.mxu0 %v95
    %526 = vmatprep.subr.mxu0 0.0
    %527 = vmatpush1.msra.mxu0 %v94
    %528 = vmatprep.subr.mxu0 0.0
    %529 = vmatpush1.msra.mxu0 %v93
    %530 = vmatprep.subr.mxu0 0.0
    %531 = vmatpush1.msra.mxu0 %v92
    %532 = vmatprep.subr.mxu0 0.0
    %533 = vmatpush2.msra.mxu0 0.0
    %534 = vmatprep.subr.mxu0 0.0
    %535 = vmatpush2.msra.mxu0 0.0
    %536 = vmatprep.subr.mxu0 0.0
    %537 = vmatpush2.msra.mxu0 0.0
    %538 = vmatprep.subr.mxu0 0.0
    %539 = vmatpush2.msra.mxu0 0.0
    %540 = vmatprep.subr.mxu0 0.0
    %541 = vmatpush2.msra.mxu0 0.0
    %542 = vmatprep.subr.mxu0 0.0
    %543 = vmatpush2.msra.mxu0 0.0
    %544 = vmatprep.subr.mxu0 0.0
    %545 = vmatpush2.msra.mxu0 0.0
    %546 = vmatprep.subr.mxu0 0.0
    %547 = vmatpush2.msra.mxu0 0.0
    %548 = vmatprep.subr.mxu0 0.0
    %549 = vmatpush2.msra.mxu0 0.0
    %550 = vmatprep.subr.mxu0 0.0
    %551 = vmatpush2.msra.mxu0 0.0
    %552 = vmatprep.subr.mxu0 0.0
    %553 = vmatpush2.msra.mxu0 0.0
    %554 = vmatprep.subr.mxu0 0.0
    %555 = vmatpush2.msra.mxu0 0.0
    %556 = vmatprep.subr.mxu0 0.0
    %557 = vmatpush2.msra.mxu0 0.0
    %558 = vmatprep.subr.mxu0 0.0
    %559 = vmatpush2.msra.mxu0 0.0
    %560 = vmatprep.subr.mxu0 0.0
    %561 = vmatpush2.msra.mxu0 0.0
    %562 = vmatprep.subr.mxu0 0.0
    %563 = vmatpush2.msra.mxu0 0.0
    %564 = vmatprep.mubr.f32.mxu0 0.0
    %565 = vmatmul.mubr.f32.gmra.mxu0 %v494
    %v566 = vpop.f32.mrf.mxu0
    %v567 = vadd.f32 0.0, %v566
    %v568 = vpop.f32.mrf.mxu0
    %569 = vmatprep.mubr.f32.mxu0 0.0
    %570 = vmatmul.mubr.f32.gmra.mxu0 %v495
    %v571 = vpop.f32.mrf.mxu0
    %v572 = vadd.f32 0.0, %v571
    %v573 = vpop.f32.mrf.mxu0
    %574 = vmatprep.mubr.f32.mxu0 0.0
    %575 = vmatmul.mubr.f32.gmra.mxu0 %v496
    %v576 = vpop.f32.mrf.mxu0
    %v577 = vadd.f32 0.0, %v576
    %v578 = vpop.f32.mrf.mxu0
    %579 = vmatprep.mubr.f32.mxu0 0.0
    %580 = vmatmul.mubr.f32.gmra.mxu0 %v497
    %v581 = vpop.f32.mrf.mxu0
    %v582 = vadd.f32 0.0, %v581
    %v583 = vpop.f32.mrf.mxu0
    %584 = vdwg.mxu0
    %v585 = vadd.f32 %v567, %v572
    %v586 = vadd.f32 %v585, %v577
    %v587 = vadd.f32 %v586, %v582
    %v588 = vrot.slane %v587, 4
    %v589 = vadd.f32 %v587, %v588
    %v590 = vrot.slane %v589, 2
    %v591 = vadd.f32 %v589, %v590
    %v592 = vrot.slane %v591, 1
    %v593 = vadd.f32 %v591, %v592
    %v594 = vmul.f32 %v494, %v494
    %v595 = vmul.f32 %v495, %v495
    %v596 = vmul.f32 %v496, %v496
    %v597 = vmul.f32 %v497, %v497
    %598 = vmatprep.subr.mxu0 0.0
    %599 = vmatpush1.msra.mxu0 %v107
    %600 = vmatprep.subr.mxu0 0.0
    %601 = vmatpush1.msra.mxu0 %v106
    %602 = vmatprep.subr.mxu0 0.0
    %603 = vmatpush1.msra.mxu0 %v105
    %604 = vmatprep.subr.mxu0 0.0
    %605 = vmatpush1.msra.mxu0 %v104
    %606 = vmatprep.subr.mxu0 0.0
    %607 = vmatpush1.msra.mxu0 %v103
    %608 = vmatprep.subr.mxu0 0.0
    %609 = vmatpush1.msra.mxu0 %v102
    %610 = vmatprep.subr.mxu0 0.0
    %611 = vmatpush1.msra.mxu0 %v101
    %612 = vmatprep.subr.mxu0 0.0
    %613 = vmatpush1.msra.mxu0 %v100
    %614 = vmatprep.subr.mxu0 0.0
    %615 = vmatpush1.msra.mxu0 %v99
    %616 = vmatprep.subr.mxu0 0.0
    %617 = vmatpush1.msra.mxu0 %v98
    %618 = vmatprep.subr.mxu0 0.0
    %619 = vmatpush1.msra.mxu0 %v97
    %620 = vmatprep.subr.mxu0 0.0
    %621 = vmatpush1.msra.mxu0 %v96
    %622 = vmatprep.subr.mxu0 0.0
    %623 = vmatpush1.msra.mxu0 %v95
    %624 = vmatprep.subr.mxu0 0.0
    %625 = vmatpush1.msra.mxu0 %v94
    %626 = vmatprep.subr.mxu0 0.0
    %627 = vmatpush1.msra.mxu0 %v93
    %628 = vmatprep.subr.mxu0 0.0
    %629 = vmatpush1.msra.mxu0 %v92
    %630 = vmatprep.subr.mxu0 0.0
    %631 = vmatpush2.msra.mxu0 0.0
    %632 = vmatprep.subr.mxu0 0.0
    %633 = vmatpush2.msra.mxu0 0.0
    %634 = vmatprep.subr.mxu0 0.0
    %635 = vmatpush2.msra.mxu0 0.0
    %636 = vmatprep.subr.mxu0 0.0
    %637 = vmatpush2.msra.mxu0 0.0
    %638 = vmatprep.subr.mxu0 0.0
    %639 = vmatpush2.msra.mxu0 0.0
    %640 = vmatprep.subr.mxu0 0.0
    %641 = vmatpush2.msra.mxu0 0.0
    %642 = vmatprep.subr.mxu0 0.0
    %643 = vmatpush2.msra.mxu0 0.0
    %644 = vmatprep.subr.mxu0 0.0
    %645 = vmatpush2.msra.mxu0 0.0
    %646 = vmatprep.subr.mxu0 0.0
    %647 = vmatpush2.msra.mxu0 0.0
    %648 = vmatprep.subr.mxu0 0.0
    %649 = vmatpush2.msra.mxu0 0.0
    %650 = vmatprep.subr.mxu0 0.0
    %651 = vmatpush2.msra.mxu0 0.0
    %652 = vmatprep.subr.mxu0 0.0
    %653 = vmatpush2.msra.mxu0 0.0
    %654 = vmatprep.subr.mxu0 0.0
    %655 = vmatpush2.msra.mxu0 0.0
    %656 = vmatprep.subr.mxu0 0.0
    %657 = vmatpush2.msra.mxu0 0.0
    %658 = vmatprep.subr.mxu0 0.0
    %659 = vmatpush2.msra.mxu0 0.0
    %660 = vmatprep.subr.mxu0 0.0
    %661 = vmatpush2.msra.mxu0 0.0
    %662 = vmatprep.mubr.f32.mxu0 0.0
    %663 = vmatmul.mubr.f32.gmra.mxu0 %v594
    %v664 = vpop.f32.mrf.mxu0
    %v665 = vadd.f32 0.0, %v664
    %v666 = vpop.f32.mrf.mxu0
    %667 = vmatprep.mubr.f32.mxu0 0.0
    %668 = vmatmul.mubr.f32.gmra.mxu0 %v595
    %v669 = vpop.f32.mrf.mxu0
    %v670 = vadd.f32 0.0, %v669
    %v671 = vpop.f32.mrf.mxu0
    %672 = vmatprep.mubr.f32.mxu0 0.0
    %673 = vmatmul.mubr.f32.gmra.mxu0 %v596
    %v674 = vpop.f32.mrf.mxu0
    %v675 = vadd.f32 0.0, %v674
    %v676 = vpop.f32.mrf.mxu0
    %677 = vmatprep.mubr.f32.mxu0 0.0
    %678 = vmatmul.mubr.f32.gmra.mxu0 %v597
    %v679 = vpop.f32.mrf.mxu0
    %v680 = vadd.f32 0.0, %v679
    %v681 = vpop.f32.mrf.mxu0
    %682 = vdwg.mxu0
    %v683 = vadd.f32 %v665, %v670
    %v684 = vadd.f32 %v683, %v675
    %v685 = vadd.f32 %v684, %v680
    %v686 = vrot.slane %v685, 4
    %v687 = vadd.f32 %v685, %v686
    %v688 = vrot.slane %v687, 2
    %v689 = vadd.f32 %v687, %v688
    %v690 = vrot.slane %v689, 1
    %v691 = vadd.f32 %v689, %v690
    %v692 = vmul.f32 %v593, 0.001953125
    %v693 = vmul.f32 %v691, 0.001953125
    %v694 = vmul.f32 %v692, %v692
    %v695 = vsub.f32 %v693, %v694
    %v696 = vadd.f32 %v695, 1e-05
    %v697 = vrsqrt.pop %v696
    %v698 = vmul.f32 %v498, %v697
    %v699 = vmul.f32 %v692, %v698
    %v700 = vsub.f32 %v499, %v699
    %v702 = vlaneseq
    %v703 = vshrl.u32 %v702, 7
    %v704 = vsub.s32 0, %v703
    %v705 = vrot.slane %v698, %v704
    %v707 = vmul.f32 %v494, %v705
    %v708 = vmul.f32 %v495, %v705
    %v709 = vmul.f32 %v496, %v705
    %v710 = vmul.f32 %v497, %v705
    %v712 = vlaneseq
    %v713 = vshrl.u32 %v712, 7
    %v714 = vsub.s32 0, %v713
    %v715 = vrot.slane %v700, %v714
    %v717 = vadd.f32 %v707, %v715
    %v718 = vadd.f32 %v708, %v715
    %v719 = vadd.f32 %v709, %v715
    %v720 = vadd.f32 %v710, %v715
    %v721 = vmax.f32 %v717, 0.0
    %v722 = vmax.f32 %v718, 0.0
    %v723 = vmax.f32 %v719, 0.0
    %v724 = vmax.f32 %v720, 0.0
    %v725 = vld [vmem:[%s6] sm:$0x1]
    %v727 = vrot.slane %v724, 7
    %v732 = vrot.slane %v721, 7
    %v733 = vrot.slane %v722, 7
    %v734 = vsel %vm176, %v732, %v733
    %v735 = vrot.slane %v723, 7
    %v736 = vsel %vm176, %v733, %v735
    %v737 = vsel %vm176, %v735, %v727
    %v742 = vsel %vm176, %v727, %v732
    %v743 = vsel %vm166, 0.0, %v742
    %v744 = vsel %vm167, 0.0, %v734
    %v745 = vsel %vm168, 0.0, %v736
    %v746 = vsel %vm169, 0.0, %v737
    %v747 = vrot.slane %v721, 1
    %v748 = vrot.slane %v722, 1
    %v749 = vsel %vm196, %v747, %v748
    %v750 = vrot.slane %v723, 1
    %v751 = vsel %vm196, %v748, %v750
    %v752 = vrot.slane %v724, 1
    %v753 = vsel %vm196, %v750, %v752
    %v759 = vsel %vm196, %v752, %v747
    %v760 = vsel %vm192, 0.0, %v749
    %v761 = vsel %vm193, 0.0, %v751
    %v762 = vsel %vm194, 0.0, %v753
    %v763 = vsel %vm195, 0.0, %v759
    %v764 = vpack.c.bf16 %v744, %v743
    %v765 = vpack.c.bf16 %v746, %v745
    %v766 = vld [vmem:[#allocation7] sm:$0xf]
    %v767 = vld [vmem:[#allocation7 + $0x4] sm:$0xf]
    %v768 = vld [vmem:[#allocation7 + $0x8] sm:$0xf]
    %v769 = vld [vmem:[#allocation7 + $0xc] sm:$0xf]
    %v770 = vld [vmem:[#allocation7 + $0x10] sm:$0xf]
    %v771 = vld [vmem:[#allocation7 + $0x14] sm:$0xf]
    %v772 = vld [vmem:[#allocation7 + $0x18] sm:$0xf]
    %v773 = vld [vmem:[#allocation7 + $0x1c] sm:$0xf]
    %v774 = vld [vmem:[#allocation7 + $0x20] sm:$0xf]
    %v775 = vld [vmem:[#allocation7 + $0x24] sm:$0xf]
    %v776 = vld [vmem:[#allocation7 + $0x28] sm:$0xf]
    %v777 = vld [vmem:[#allocation7 + $0x2c] sm:$0xf]
    %v778 = vld [vmem:[#allocation7 + $0x30] sm:$0xf]
    %v779 = vld [vmem:[#allocation7 + $0x34] sm:$0xf]
    %v780 = vld [vmem:[#allocation7 + $0x38] sm:$0xf]
    %v781 = vld [vmem:[#allocation7 + $0x3c] sm:$0xf]
    %v782 = vpack.c.bf16 %v722, %v721
    %v783 = vpack.c.bf16 %v724, %v723
    %s784 = scalar_lea.vmem [#allocation7], 64
    %v785 = vld [vmem:[%s784] sm:$0xf]
    %v786 = vld [vmem:[%s784 + $0x4] sm:$0xf]
    %v787 = vld [vmem:[%s784 + $0x8] sm:$0xf]
    %v788 = vld [vmem:[%s784 + $0xc] sm:$0xf]
    %v789 = vld [vmem:[%s784 + $0x10] sm:$0xf]
    %v790 = vld [vmem:[%s784 + $0x14] sm:$0xf]
    %v791 = vld [vmem:[%s784 + $0x18] sm:$0xf]
    %v792 = vld [vmem:[%s784 + $0x1c] sm:$0xf]
    %v793 = vld [vmem:[%s784 + $0x20] sm:$0xf]
    %v794 = vld [vmem:[%s784 + $0x24] sm:$0xf]
    %v795 = vld [vmem:[%s784 + $0x28] sm:$0xf]
    %v796 = vld [vmem:[%s784 + $0x2c] sm:$0xf]
    %v797 = vld [vmem:[%s784 + $0x30] sm:$0xf]
    %v798 = vld [vmem:[%s784 + $0x34] sm:$0xf]
    %v799 = vld [vmem:[%s784 + $0x38] sm:$0xf]
    %v800 = vld [vmem:[%s784 + $0x3c] sm:$0xf]
    %v817 = vunpack.c.l.b16 %v785
    %v818 = vunpack.c.l.b16 %v786
    %v819 = vunpack.c.l.b16 %v787
    %v820 = vunpack.c.l.b16 %v788
    %v821 = vunpack.c.l.b16 %v789
    %v822 = vunpack.c.l.b16 %v790
    %v823 = vunpack.c.l.b16 %v791
    %v824 = vunpack.c.l.b16 %v792
    %v825 = vunpack.c.l.b16 %v793
    %v826 = vunpack.c.l.b16 %v794
    %v827 = vunpack.c.l.b16 %v795
    %v828 = vunpack.c.l.b16 %v796
    %v829 = vunpack.c.l.b16 %v797
    %v830 = vunpack.c.l.b16 %v798
    %v831 = vunpack.c.l.b16 %v799
    %v832 = vunpack.c.l.b16 %v800
    %v833 = vpack.c.b16 %v818, %v817
    %v834 = vpack.c.b16 %v820, %v819
    %v835 = vpack.c.b16 %v822, %v821
    %v836 = vpack.c.b16 %v824, %v823
    %v837 = vpack.c.b16 %v826, %v825
    %v838 = vpack.c.b16 %v828, %v827
    %v839 = vpack.c.b16 %v830, %v829
    %v840 = vpack.c.b16 %v832, %v831
    %849 = vmatprep.subr.bf16.mxu0 0
    %850 = vmatpush1.bf16.msra.mxu0 %v840
    %851 = vmatprep.subr.bf16.mxu0 0
    %852 = vmatpush1.bf16.msra.mxu0 %v839
    %853 = vmatprep.subr.bf16.mxu0 0
    %854 = vmatpush1.bf16.msra.mxu0 %v838
    %855 = vmatprep.subr.bf16.mxu0 0
    %856 = vmatpush1.bf16.msra.mxu0 %v837
    %857 = vmatprep.subr.bf16.mxu0 0
    %858 = vmatpush1.bf16.msra.mxu0 %v836
    %859 = vmatprep.subr.bf16.mxu0 0
    %860 = vmatpush1.bf16.msra.mxu0 %v835
    %861 = vmatprep.subr.bf16.mxu0 0
    %862 = vmatpush1.bf16.msra.mxu0 %v834
    %863 = vmatprep.subr.bf16.mxu0 0
    %864 = vmatpush1.bf16.msra.mxu0 %v833
    %865 = vmatprep.subr.bf16.mxu0 0
    %866 = vmatpush2.bf16.msra.mxu0 0
    %867 = vmatprep.subr.bf16.mxu0 0
    %868 = vmatpush2.bf16.msra.mxu0 0
    %869 = vmatprep.subr.bf16.mxu0 0
    %870 = vmatpush2.bf16.msra.mxu0 0
    %871 = vmatprep.subr.bf16.mxu0 0
    %872 = vmatpush2.bf16.msra.mxu0 0
    %873 = vmatprep.subr.bf16.mxu0 0
    %874 = vmatpush2.bf16.msra.mxu0 0
    %875 = vmatprep.subr.bf16.mxu0 0
    %876 = vmatpush2.bf16.msra.mxu0 0
    %877 = vmatprep.subr.bf16.mxu0 0
    %878 = vmatpush2.bf16.msra.mxu0 0
    %879 = vmatprep.subr.bf16.mxu0 0
    %880 = vmatpush2.bf16.msra.mxu0 0
    %881 = vmatprep.mubr.bf16.mxu0 0
    %882 = vmatmul.mubr.bf16.gmra.mxu0 %v782
    %v883 = vpop.f32.mrf.mxu0
    %v884 = vadd.f32 0.0, %v883
    %v885 = vpop.f32.mrf.mxu0
    %v886 = vpop.f32.mrf.mxu0
    %v887 = vadd.f32 0.0, %v886
    %v888 = vpop.f32.mrf.mxu0
    %889 = vmatprep.mubr.bf16.mxu0 0
    %890 = vmatmul.mubr.bf16.gmra.mxu0 %v783
    %v891 = vpop.f32.mrf.mxu0
    %v892 = vadd.f32 0.0, %v891
    %v893 = vpop.f32.mrf.mxu0
    %v894 = vpop.f32.mrf.mxu0
    %v895 = vadd.f32 0.0, %v894
    %v896 = vpop.f32.mrf.mxu0
    %897 = vdwg.mxu0
    %v914 = vunpack.c.l.b16 %v766
    %v915 = vunpack.c.l.b16 %v767
    %v916 = vunpack.c.l.b16 %v768
    %v917 = vunpack.c.l.b16 %v769
    %v918 = vunpack.c.l.b16 %v770
    %v919 = vunpack.c.l.b16 %v771
    %v920 = vunpack.c.l.b16 %v772
    %v921 = vunpack.c.l.b16 %v773
    %v922 = vunpack.c.l.b16 %v774
    %v923 = vunpack.c.l.b16 %v775
    %v924 = vunpack.c.l.b16 %v776
    %v925 = vunpack.c.l.b16 %v777
    %v926 = vunpack.c.l.b16 %v778
    %v927 = vunpack.c.l.b16 %v779
    %v928 = vunpack.c.l.b16 %v780
    %v929 = vunpack.c.l.b16 %v781
    %v930 = vpack.c.b16 %v915, %v914
    %v931 = vpack.c.b16 %v917, %v916
    %v932 = vpack.c.b16 %v919, %v918
    %v933 = vpack.c.b16 %v921, %v920
    %v934 = vpack.c.b16 %v923, %v922
    %v935 = vpack.c.b16 %v925, %v924
    %v936 = vpack.c.b16 %v927, %v926
    %v937 = vpack.c.b16 %v929, %v928
    %946 = vmatprep.subr.bf16.mxu0 0
    %947 = vmatpush1.bf16.msra.mxu0 %v937
    %948 = vmatprep.subr.bf16.mxu0 0
    %949 = vmatpush1.bf16.msra.mxu0 %v936
    %950 = vmatprep.subr.bf16.mxu0 0
    %951 = vmatpush1.bf16.msra.mxu0 %v935
    %952 = vmatprep.subr.bf16.mxu0 0
    %953 = vmatpush1.bf16.msra.mxu0 %v934
    %954 = vmatprep.subr.bf16.mxu0 0
    %955 = vmatpush1.bf16.msra.mxu0 %v933
    %956 = vmatprep.subr.bf16.mxu0 0
    %957 = vmatpush1.bf16.msra.mxu0 %v932
    %958 = vmatprep.subr.bf16.mxu0 0
    %959 = vmatpush1.bf16.msra.mxu0 %v931
    %960 = vmatprep.subr.bf16.mxu0 0
    %961 = vmatpush1.bf16.msra.mxu0 %v930
    %962 = vmatprep.subr.bf16.mxu0 0
    %963 = vmatpush2.bf16.msra.mxu0 0
    %964 = vmatprep.subr.bf16.mxu0 0
    %965 = vmatpush2.bf16.msra.mxu0 0
    %966 = vmatprep.subr.bf16.mxu0 0
    %967 = vmatpush2.bf16.msra.mxu0 0
    %968 = vmatprep.subr.bf16.mxu0 0
    %969 = vmatpush2.bf16.msra.mxu0 0
    %970 = vmatprep.subr.bf16.mxu0 0
    %971 = vmatpush2.bf16.msra.mxu0 0
    %972 = vmatprep.subr.bf16.mxu0 0
    %973 = vmatpush2.bf16.msra.mxu0 0
    %974 = vmatprep.subr.bf16.mxu0 0
    %975 = vmatpush2.bf16.msra.mxu0 0
    %976 = vmatprep.subr.bf16.mxu0 0
    %977 = vmatpush2.bf16.msra.mxu0 0
    %978 = vmatprep.mubr.bf16.mxu0 0
    %979 = vmatmul.mubr.bf16.gmra.mxu0 %v764
    %v980 = vpop.f32.mrf.mxu0
    %v981 = vadd.f32 %v884, %v980
    %v982 = vpop.f32.mrf.mxu0
    %v983 = vpop.f32.mrf.mxu0
    %v984 = vadd.f32 %v887, %v983
    %v985 = vpop.f32.mrf.mxu0
    %986 = vmatprep.mubr.bf16.mxu0 0
    %987 = vmatmul.mubr.bf16.gmra.mxu0 %v765
    %v988 = vpop.f32.mrf.mxu0
    %v989 = vadd.f32 %v892, %v988
    %v990 = vpop.f32.mrf.mxu0
    %v991 = vpop.f32.mrf.mxu0
    %v992 = vadd.f32 %v895, %v991
    %v993 = vpop.f32.mrf.mxu0
    %994 = vdwg.mxu0
    %v995 = vpack.c.bf16 %v761, %v760
    %v996 = vpack.c.bf16 %v763, %v762
    %s997 = scalar_lea.vmem [#allocation7], 128
    %v998 = vld [vmem:[%s997] sm:$0xf]
    %v999 = vld [vmem:[%s997 + $0x4] sm:$0xf]
    %v1000 = vld [vmem:[%s997 + $0x8] sm:$0xf]
    %v1001 = vld [vmem:[%s997 + $0xc] sm:$0xf]
    %v1002 = vld [vmem:[%s997 + $0x10] sm:$0xf]
    %v1003 = vld [vmem:[%s997 + $0x14] sm:$0xf]
    %v1004 = vld [vmem:[%s997 + $0x18] sm:$0xf]
    %v1005 = vld [vmem:[%s997 + $0x1c] sm:$0xf]
    %v1006 = vld [vmem:[%s997 + $0x20] sm:$0xf]
    %v1007 = vld [vmem:[%s997 + $0x24] sm:$0xf]
    %v1008 = vld [vmem:[%s997 + $0x28] sm:$0xf]
    %v1009 = vld [vmem:[%s997 + $0x2c] sm:$0xf]
    %v1010 = vld [vmem:[%s997 + $0x30] sm:$0xf]
    %v1011 = vld [vmem:[%s997 + $0x34] sm:$0xf]
    %v1012 = vld [vmem:[%s997 + $0x38] sm:$0xf]
    %v1013 = vld [vmem:[%s997 + $0x3c] sm:$0xf]
    %v1030 = vunpack.c.l.b16 %v998
    %v1031 = vunpack.c.l.b16 %v999
    %v1032 = vunpack.c.l.b16 %v1000
    %v1033 = vunpack.c.l.b16 %v1001
    %v1034 = vunpack.c.l.b16 %v1002
    %v1035 = vunpack.c.l.b16 %v1003
    %v1036 = vunpack.c.l.b16 %v1004
    %v1037 = vunpack.c.l.b16 %v1005
    %v1038 = vunpack.c.l.b16 %v1006
    %v1039 = vunpack.c.l.b16 %v1007
    %v1040 = vunpack.c.l.b16 %v1008
    %v1041 = vunpack.c.l.b16 %v1009
    %v1042 = vunpack.c.l.b16 %v1010
    %v1043 = vunpack.c.l.b16 %v1011
    %v1044 = vunpack.c.l.b16 %v1012
    %v1045 = vunpack.c.l.b16 %v1013
    %v1046 = vpack.c.b16 %v1031, %v1030
    %v1047 = vpack.c.b16 %v1033, %v1032
    %v1048 = vpack.c.b16 %v1035, %v1034
    %v1049 = vpack.c.b16 %v1037, %v1036
    %v1050 = vpack.c.b16 %v1039, %v1038
    %v1051 = vpack.c.b16 %v1041, %v1040
    %v1052 = vpack.c.b16 %v1043, %v1042
    %v1053 = vpack.c.b16 %v1045, %v1044
    %1062 = vmatprep.subr.bf16.mxu0 0
    %1063 = vmatpush1.bf16.msra.mxu0 %v1053
    %1064 = vmatprep.subr.bf16.mxu0 0
    %1065 = vmatpush1.bf16.msra.mxu0 %v1052
    %1066 = vmatprep.subr.bf16.mxu0 0
    %1067 = vmatpush1.bf16.msra.mxu0 %v1051
    %1068 = vmatprep.subr.bf16.mxu0 0
    %1069 = vmatpush1.bf16.msra.mxu0 %v1050
    %1070 = vmatprep.subr.bf16.mxu0 0
    %1071 = vmatpush1.bf16.msra.mxu0 %v1049
    %1072 = vmatprep.subr.bf16.mxu0 0
    %1073 = vmatpush1.bf16.msra.mxu0 %v1048
    %1074 = vmatprep.subr.bf16.mxu0 0
    %1075 = vmatpush1.bf16.msra.mxu0 %v1047
    %1076 = vmatprep.subr.bf16.mxu0 0
    %1077 = vmatpush1.bf16.msra.mxu0 %v1046
    %1078 = vmatprep.subr.bf16.mxu0 0
    %1079 = vmatpush2.bf16.msra.mxu0 0
    %1080 = vmatprep.subr.bf16.mxu0 0
    %1081 = vmatpush2.bf16.msra.mxu0 0
    %1082 = vmatprep.subr.bf16.mxu0 0
    %1083 = vmatpush2.bf16.msra.mxu0 0
    %1084 = vmatprep.subr.bf16.mxu0 0
    %1085 = vmatpush2.bf16.msra.mxu0 0
    %1086 = vmatprep.subr.bf16.mxu0 0
    %1087 = vmatpush2.bf16.msra.mxu0 0
    %1088 = vmatprep.subr.bf16.mxu0 0
    %1089 = vmatpush2.bf16.msra.mxu0 0
    %1090 = vmatprep.subr.bf16.mxu0 0
    %1091 = vmatpush2.bf16.msra.mxu0 0
    %1092 = vmatprep.subr.bf16.mxu0 0
    %1093 = vmatpush2.bf16.msra.mxu0 0
    %1094 = vmatprep.mubr.bf16.mxu0 0
    %1095 = vmatmul.mubr.bf16.gmra.mxu0 %v995
    %v1096 = vpop.f32.mrf.mxu0
    %v1097 = vadd.f32 0.0, %v1096
    %v1098 = vpop.f32.mrf.mxu0
    %v1099 = vpop.f32.mrf.mxu0
    %v1100 = vadd.f32 0.0, %v1099
    %v1101 = vpop.f32.mrf.mxu0
    %1102 = vmatprep.mubr.bf16.mxu0 0
    %1103 = vmatmul.mubr.bf16.gmra.mxu0 %v996
    %v1104 = vpop.f32.mrf.mxu0
    %v1105 = vadd.f32 0.0, %v1104
    %v1106 = vpop.f32.mrf.mxu0
    %v1107 = vpop.f32.mrf.mxu0
    %v1108 = vadd.f32 0.0, %v1107
    %v1109 = vpop.f32.mrf.mxu0
    %1110 = vdwg.mxu0
    %v1111 = vadd.f32 %v981, %v1097
    %v1112 = vadd.f32 %v984, %v1100
    %v1113 = vadd.f32 %v989, %v1105
    %v1114 = vadd.f32 %v992, %v1108
    %v1116 = vlaneseq
    %v1117 = vshrl.u32 %v1116, 7
    %v1118 = vsub.s32 0, %v1117
    %v1119 = vrot.slane %v725, %v1118
    %v1121 = vadd.f32 %v1111, %v1119
    %v1122 = vadd.f32 %v1112, %v1119
    %v1123 = vadd.f32 %v1113, %v1119
    %v1124 = vadd.f32 %v1114, %v1119
    %v1125 = vld [vmem:[%s7] sm:$0x1]
    %v1126 = vld [vmem:[%s8] sm:$0x1]
    %1127 = vmatprep.subr.mxu0 0.0
    %1128 = vmatpush1.msra.mxu0 %v107
    %1129 = vmatprep.subr.mxu0 0.0
    %1130 = vmatpush1.msra.mxu0 %v106
    %1131 = vmatprep.subr.mxu0 0.0
    %1132 = vmatpush1.msra.mxu0 %v105
    %1133 = vmatprep.subr.mxu0 0.0
    %1134 = vmatpush1.msra.mxu0 %v104
    %1135 = vmatprep.subr.mxu0 0.0
    %1136 = vmatpush1.msra.mxu0 %v103
    %1137 = vmatprep.subr.mxu0 0.0
    %1138 = vmatpush1.msra.mxu0 %v102
    %1139 = vmatprep.subr.mxu0 0.0
    %1140 = vmatpush1.msra.mxu0 %v101
    %1141 = vmatprep.subr.mxu0 0.0
    %1142 = vmatpush1.msra.mxu0 %v100
    %1143 = vmatprep.subr.mxu0 0.0
    %1144 = vmatpush1.msra.mxu0 %v99
    %1145 = vmatprep.subr.mxu0 0.0
    %1146 = vmatpush1.msra.mxu0 %v98
    %1147 = vmatprep.subr.mxu0 0.0
    %1148 = vmatpush1.msra.mxu0 %v97
    %1149 = vmatprep.subr.mxu0 0.0
    %1150 = vmatpush1.msra.mxu0 %v96
    %1151 = vmatprep.subr.mxu0 0.0
    %1152 = vmatpush1.msra.mxu0 %v95
    %1153 = vmatprep.subr.mxu0 0.0
    %1154 = vmatpush1.msra.mxu0 %v94
    %1155 = vmatprep.subr.mxu0 0.0
    %1156 = vmatpush1.msra.mxu0 %v93
    %1157 = vmatprep.subr.mxu0 0.0
    %1158 = vmatpush1.msra.mxu0 %v92
    %1159 = vmatprep.subr.mxu0 0.0
    %1160 = vmatpush2.msra.mxu0 0.0
    %1161 = vmatprep.subr.mxu0 0.0
    %1162 = vmatpush2.msra.mxu0 0.0
    %1163 = vmatprep.subr.mxu0 0.0
    %1164 = vmatpush2.msra.mxu0 0.0
    %1165 = vmatprep.subr.mxu0 0.0
    %1166 = vmatpush2.msra.mxu0 0.0
    %1167 = vmatprep.subr.mxu0 0.0
    %1168 = vmatpush2.msra.mxu0 0.0
    %1169 = vmatprep.subr.mxu0 0.0
    %1170 = vmatpush2.msra.mxu0 0.0
    %1171 = vmatprep.subr.mxu0 0.0
    %1172 = vmatpush2.msra.mxu0 0.0
    %1173 = vmatprep.subr.mxu0 0.0
    %1174 = vmatpush2.msra.mxu0 0.0
    %1175 = vmatprep.subr.mxu0 0.0
    %1176 = vmatpush2.msra.mxu0 0.0
    %1177 = vmatprep.subr.mxu0 0.0
    %1178 = vmatpush2.msra.mxu0 0.0
    %1179 = vmatprep.subr.mxu0 0.0
    %1180 = vmatpush2.msra.mxu0 0.0
    %1181 = vmatprep.subr.mxu0 0.0
    %1182 = vmatpush2.msra.mxu0 0.0
    %1183 = vmatprep.subr.mxu0 0.0
    %1184 = vmatpush2.msra.mxu0 0.0
    %1185 = vmatprep.subr.mxu0 0.0
    %1186 = vmatpush2.msra.mxu0 0.0
    %1187 = vmatprep.subr.mxu0 0.0
    %1188 = vmatpush2.msra.mxu0 0.0
    %1189 = vmatprep.subr.mxu0 0.0
    %1190 = vmatpush2.msra.mxu0 0.0
    %1191 = vmatprep.mubr.f32.mxu0 0.0
    %1192 = vmatmul.mubr.f32.gmra.mxu0 %v1121
    %v1193 = vpop.f32.mrf.mxu0
    %v1194 = vadd.f32 0.0, %v1193
    %v1195 = vpop.f32.mrf.mxu0
    %1196 = vmatprep.mubr.f32.mxu0 0.0
    %1197 = vmatmul.mubr.f32.gmra.mxu0 %v1122
    %v1198 = vpop.f32.mrf.mxu0
    %v1199 = vadd.f32 0.0, %v1198
    %v1200 = vpop.f32.mrf.mxu0
    %1201 = vmatprep.mubr.f32.mxu0 0.0
    %1202 = vmatmul.mubr.f32.gmra.mxu0 %v1123
    %v1203 = vpop.f32.mrf.mxu0
    %v1204 = vadd.f32 0.0, %v1203
    %v1205 = vpop.f32.mrf.mxu0
    %1206 = vmatprep.mubr.f32.mxu0 0.0
    %1207 = vmatmul.mubr.f32.gmra.mxu0 %v1124
    %v1208 = vpop.f32.mrf.mxu0
    %v1209 = vadd.f32 0.0, %v1208
    %v1210 = vpop.f32.mrf.mxu0
    %1211 = vdwg.mxu0
    %v1212 = vadd.f32 %v1194, %v1199
    %v1213 = vadd.f32 %v1212, %v1204
    %v1214 = vadd.f32 %v1213, %v1209
    %v1215 = vrot.slane %v1214, 4
    %v1216 = vadd.f32 %v1214, %v1215
    %v1217 = vrot.slane %v1216, 2
    %v1218 = vadd.f32 %v1216, %v1217
    %v1219 = vrot.slane %v1218, 1
    %v1220 = vadd.f32 %v1218, %v1219
    %v1221 = vmul.f32 %v1121, %v1121
    %v1222 = vmul.f32 %v1122, %v1122
    %v1223 = vmul.f32 %v1123, %v1123
    %v1224 = vmul.f32 %v1124, %v1124
    %1225 = vmatprep.subr.mxu0 0.0
    %1226 = vmatpush1.msra.mxu0 %v107
    %1227 = vmatprep.subr.mxu0 0.0
    %1228 = vmatpush1.msra.mxu0 %v106
    %1229 = vmatprep.subr.mxu0 0.0
    %1230 = vmatpush1.msra.mxu0 %v105
    %1231 = vmatprep.subr.mxu0 0.0
    %1232 = vmatpush1.msra.mxu0 %v104
    %1233 = vmatprep.subr.mxu0 0.0
    %1234 = vmatpush1.msra.mxu0 %v103
    %1235 = vmatprep.subr.mxu0 0.0
    %1236 = vmatpush1.msra.mxu0 %v102
    %1237 = vmatprep.subr.mxu0 0.0
    %1238 = vmatpush1.msra.mxu0 %v101
    %1239 = vmatprep.subr.mxu0 0.0
    %1240 = vmatpush1.msra.mxu0 %v100
    %1241 = vmatprep.subr.mxu0 0.0
    %1242 = vmatpush1.msra.mxu0 %v99
    %1243 = vmatprep.subr.mxu0 0.0
    %1244 = vmatpush1.msra.mxu0 %v98
    %1245 = vmatprep.subr.mxu0 0.0
    %1246 = vmatpush1.msra.mxu0 %v97
    %1247 = vmatprep.subr.mxu0 0.0
    %1248 = vmatpush1.msra.mxu0 %v96
    %1249 = vmatprep.subr.mxu0 0.0
    %1250 = vmatpush1.msra.mxu0 %v95
    %1251 = vmatprep.subr.mxu0 0.0
    %1252 = vmatpush1.msra.mxu0 %v94
    %1253 = vmatprep.subr.mxu0 0.0
    %1254 = vmatpush1.msra.mxu0 %v93
    %1255 = vmatprep.subr.mxu0 0.0
    %1256 = vmatpush1.msra.mxu0 %v92
    %1257 = vmatprep.subr.mxu0 0.0
    %1258 = vmatpush2.msra.mxu0 0.0
    %1259 = vmatprep.subr.mxu0 0.0
    %1260 = vmatpush2.msra.mxu0 0.0
    %1261 = vmatprep.subr.mxu0 0.0
    %1262 = vmatpush2.msra.mxu0 0.0
    %1263 = vmatprep.subr.mxu0 0.0
    %1264 = vmatpush2.msra.mxu0 0.0
    %1265 = vmatprep.subr.mxu0 0.0
    %1266 = vmatpush2.msra.mxu0 0.0
    %1267 = vmatprep.subr.mxu0 0.0
    %1268 = vmatpush2.msra.mxu0 0.0
    %1269 = vmatprep.subr.mxu0 0.0
    %1270 = vmatpush2.msra.mxu0 0.0
    %1271 = vmatprep.subr.mxu0 0.0
    %1272 = vmatpush2.msra.mxu0 0.0
    %1273 = vmatprep.subr.mxu0 0.0
    %1274 = vmatpush2.msra.mxu0 0.0
    %1275 = vmatprep.subr.mxu0 0.0
    %1276 = vmatpush2.msra.mxu0 0.0
    %1277 = vmatprep.subr.mxu0 0.0
    %1278 = vmatpush2.msra.mxu0 0.0
    %1279 = vmatprep.subr.mxu0 0.0
    %1280 = vmatpush2.msra.mxu0 0.0
    %1281 = vmatprep.subr.mxu0 0.0
    %1282 = vmatpush2.msra.mxu0 0.0
    %1283 = vmatprep.subr.mxu0 0.0
    %1284 = vmatpush2.msra.mxu0 0.0
    %1285 = vmatprep.subr.mxu0 0.0
    %1286 = vmatpush2.msra.mxu0 0.0
    %1287 = vmatprep.subr.mxu0 0.0
    %1288 = vmatpush2.msra.mxu0 0.0
    %1289 = vmatprep.mubr.f32.mxu0 0.0
    %1290 = vmatmul.mubr.f32.gmra.mxu0 %v1221
    %v1291 = vpop.f32.mrf.mxu0
    %v1292 = vadd.f32 0.0, %v1291
    %v1293 = vpop.f32.mrf.mxu0
    %1294 = vmatprep.mubr.f32.mxu0 0.0
    %1295 = vmatmul.mubr.f32.gmra.mxu0 %v1222
    %v1296 = vpop.f32.mrf.mxu0
    %v1297 = vadd.f32 0.0, %v1296
    %v1298 = vpop.f32.mrf.mxu0
    %1299 = vmatprep.mubr.f32.mxu0 0.0
    %1300 = vmatmul.mubr.f32.gmra.mxu0 %v1223
    %v1301 = vpop.f32.mrf.mxu0
    %v1302 = vadd.f32 0.0, %v1301
    %v1303 = vpop.f32.mrf.mxu0
    %1304 = vmatprep.mubr.f32.mxu0 0.0
    %1305 = vmatmul.mubr.f32.gmra.mxu0 %v1224
    %v1306 = vpop.f32.mrf.mxu0
    %v1307 = vadd.f32 0.0, %v1306
    %v1308 = vpop.f32.mrf.mxu0
    %1309 = vdwg.mxu0
    %v1310 = vadd.f32 %v1292, %v1297
    %v1311 = vadd.f32 %v1310, %v1302
    %v1312 = vadd.f32 %v1311, %v1307
    %v1313 = vrot.slane %v1312, 4
    %v1314 = vadd.f32 %v1312, %v1313
    %v1315 = vrot.slane %v1314, 2
    %v1316 = vadd.f32 %v1314, %v1315
    %v1317 = vrot.slane %v1316, 1
    %v1318 = vadd.f32 %v1316, %v1317
    %v1319 = vmul.f32 %v1220, 0.001953125
    %v1320 = vmul.f32 %v1318, 0.001953125
    %v1321 = vmul.f32 %v1319, %v1319
    %v1322 = vsub.f32 %v1320, %v1321
    %v1323 = vadd.f32 %v1322, 1e-05
    %v1324 = vrsqrt.pop %v1323
    %v1325 = vmul.f32 %v1125, %v1324
    %v1326 = vmul.f32 %v1319, %v1325
    %v1327 = vsub.f32 %v1126, %v1326
    %v1329 = vlaneseq
    %v1330 = vshrl.u32 %v1329, 7
    %v1331 = vsub.s32 0, %v1330
    %v1332 = vrot.slane %v1325, %v1331
    %v1334 = vmul.f32 %v1121, %v1332
    %v1335 = vmul.f32 %v1122, %v1332
    %v1336 = vmul.f32 %v1123, %v1332
    %v1337 = vmul.f32 %v1124, %v1332
    %v1339 = vlaneseq
    %v1340 = vshrl.u32 %v1339, 7
    %v1341 = vsub.s32 0, %v1340
    %v1342 = vrot.slane %v1327, %v1341
    %v1344 = vadd.f32 %v1334, %v1342
    %v1345 = vadd.f32 %v1335, %v1342
    %v1346 = vadd.f32 %v1336, %v1342
    %v1347 = vadd.f32 %v1337, %v1342
    %v1348 = vmax.f32 %v1344, 0.0
    %v1349 = vmax.f32 %v1345, 0.0
    %v1350 = vmax.f32 %v1346, 0.0
    %v1351 = vmax.f32 %v1347, 0.0
    %1352 = vst [vmem:[#allocation10] sm:$0xff] %v1348
    %1353 = vst [vmem:[#allocation10 + $0x8] sm:$0xff] %v1349
    %1354 = vst [vmem:[#allocation10 + $0x10] sm:$0xff] %v1350
    %1355 = vst [vmem:[#allocation10 + $0x18] sm:$0xff] %v1351
    // Predicated region
    $region58: #{tpu_custom_call.1} parent=1 // pred_check
      _
    $region59: #{tpu_custom_call.1} parent=1 // pred_check_branch
      %1357 = sbr.rel (0) target = $region61
    $region60: #{tpu_custom_call.1} parent=1 // pred_region
      %s1359 = ssub.s32 512, 512
      %1360 = vsyncadd [#allocation4], %s1359
      %s1361 = sshll.u32 [#allocation10], 4
      %s1362 = int_to_ptr.vmem [resolvable:$true] %s1361
      %1367 = dma.vmem_to_hbm [thread:$0]  %s1362, 512, %s10, [#allocation4], 128, 128, 8
    $region61: #{tpu_custom_call.1} parent=1 // pred_fallthru
      _
    // Predicated region
    $region62: #{tpu_custom_call.1} parent=1 // pred_check
      _
    $region63: #{tpu_custom_call.1} parent=1 // pred_check_branch
      %1369 = sbr.rel (0) target = $region65
    $region64: #{tpu_custom_call.1} parent=1 // pred_region
      %1370 = dma.done [#allocation4], 512
    $region65: #{tpu_custom_call.1} parent=1 // pred_fallthru
      _
    %1371 = vsyncpa [#allocation3], 1
    %1372 = vsyncpa [#allocation6], 1
    %1373 = vsyncpa [#allocation9], 1
    %1374 = vsyncpa [#allocation4], 1

</llo_original>
